<compile_context>
chip_gen: v6e
topology: v6e:2x2x1
jax: 0.10.0
libtpu: 0.0.40
codegen_flags: <defaults>
</compile_context>

<pallas_src>
import functools

import numpy as np
import jax
import jax.numpy as jnp
from jax.experimental import pallas as pl
from jax.experimental.pallas import tpu as pltpu


def _window_attn_kernel(x_ref, w3_ref, b3_ref, bias_ref, sel_ref, wp_ref,
                        bp_ref, o_ref, *, num_heads):
    # x_ref:    (Bblk, N, C)   block of windows (compute dtype, e.g. bf16)
    # w3_ref:   (3, C, C)      [Wq*scale, Wk, Wv], (in, out) layout (bf16)
    # b3_ref:   (3, 1, C)      [bq*scale, bk, bv] (f32)
    # bias_ref: (N, H*N)       relative-position bias, heads packed on lanes (f32)
    # sel_ref:  (H*N, C)       0/1 head selector: sel[h*N+k, c] = (c//hd == h) (bf16)
    # wp_ref:   (C, C)         output projection weight, (in, out) (bf16)
    # bp_ref:   (1, C)         output projection bias (f32)
    # o_ref:    (Bblk, N, C)   output block (x.dtype)
    Bblk, N, C = x_ref.shape
    H = num_heads
    HN = H * N
    T = Bblk * N
    cdt = w3_ref.dtype                      # compute dtype for MXU operands

    x = x_ref[...].reshape(T, C)

    # ---- Q / K / V projections: three (T, C) @ (C, C) MXU matmuls ----------
    # (three separate matmuls instead of one (T, 3C) so no 32-lane column
    #  slices of the activation are ever needed.)
    def _proj(i):
        y = jnp.dot(x, w3_ref[i], preferred_element_type=jnp.float32)
        return (y + b3_ref[i]).astype(cdt).reshape(Bblk, N, C)

    q = _proj(0)        # q weight / bias pre-scaled by head_dim**-0.5 on host
    k = _proj(1)
    v = _proj(2)

    # ---- head-packed block-diagonal K / V stacks: (Bblk, H*N, C) ------------
    sel = sel_ref[...]                                   # (HN, C) 0/1, bf16
    kst = jnp.tile(k, (1, H, 1)) * sel[None]             # row h*N+m -> k[m] masked to head h
    vst = jnp.tile(v, (1, H, 1)) * sel[None]

    # ---- scores for all heads in one lane-dense matmul per window ----------
    # s[b, n, h*N + m] = sum_{c in head h} q[b, n, c] * k[b, m, c]
    s = jnp.einsum("bnc,bmc->bnm", q, kst,
                   preferred_element_type=jnp.float32)   # (Bblk, N, HN) f32
    s = s + bias_ref[...][None]

    # Segmented softmax over each head's N keys.  Shifting by the full-row max
    # is exact (softmax is shift-invariant within every head segment); only a
    # pathological >80-logit spread between heads could underflow, which the
    # denominator floor below guards against.
    s = s - jnp.max(s, axis=-1, keepdims=True)
    p = jnp.exp(s).astype(cdt)                           # unnormalized probs

    # Per-head denominators, broadcast to that head's channel block: (Bblk,N,C)
    denom = jnp.dot(p.reshape(T, HN), sel,
                    preferred_element_type=jnp.float32).reshape(Bblk, N, C)
    denom = jnp.maximum(denom, 1e-30)

    # Head-concatenated context: ctx[b,n,c] = sum_m p[b,n,(c//hd)*N+m] * v[b,m,c]
    ctx = jnp.einsum("bnm,bmc->bnc", p, vst,
                     preferred_element_type=jnp.float32)
    ctx = ctx * pl.reciprocal(denom, approx=True)

    # ---- output projection: one (T, C) @ (C, C) matmul ----------------------
    y = jnp.dot(ctx.reshape(T, C).astype(cdt), wp_ref[...],
                preferred_element_type=jnp.float32)
    y = y + bp_ref[0]
    # NOTE: C = 32 < 128 lanes -> masked partial stores; a channel-major (C,T)
    # output layout (review item 4) would fix this but requires restructuring
    # the whole attention core channel-major — skipped.
    o_ref[...] = y.reshape(Bblk, N, C).astype(o_ref.dtype)


def _vmem_limit_bytes():
    """Scoped-VMEM limit derived per chip (v7x: 64 MiB physical per core)."""
    try:
        cap = int(pltpu.get_tpu_info().vmem_capacity_bytes)
    except Exception:
        cap = 0
    if cap <= 0:
        cap = 64 * 1024 * 1024          # conservative fallback (v7x per-core VMEM)
    return max(32 * 1024 * 1024, min(3 * cap // 4, 96 * 1024 * 1024))


def window_attention_3d(x, params, window_size, num_heads, qk_scale=None,
                        block_b=64, compute_dtype=jnp.bfloat16):
    """x: (B_, N, C) with N == prod(window_size).  mask=None path only."""
    B_, N, C = x.shape
    assert N == int(np.prod(window_size))
    assert C % num_heads == 0
    head_dim = C // num_heads
    HN = num_heads * N
    scale = qk_scale if qk_scale is not None else head_dim ** (-0.5)
    out_dtype = x.dtype

    # ---- relative position bias, heads packed on the lane axis: (N, H*N) ---
    rel_index = _relative_position_index(window_size)               # (N, N)
    table = params["rel_pos_bias_table"]                            # (L, H)
    rel_bias = table[rel_index.reshape(-1)].reshape(N, N, num_heads)  # (q, k, h)
    bias_packed = jnp.transpose(rel_bias, (0, 2, 1)).reshape(N, HN)
    bias_packed = bias_packed.astype(jnp.float32)                   # [q, h*N+k]

    # ---- split QKV weights; fold the q scale into the q weight & bias ------
    wqkv = params["wqkv"].astype(jnp.float32)                       # (C, 3C)
    bqkv = params["bqkv"].astype(jnp.float32)                       # (3C,)
    w3 = jnp.stack([wqkv[:, :C] * scale, wqkv[:, C:2 * C], wqkv[:, 2 * C:]])
    w3 = w3.astype(compute_dtype)                                   # (3, C, C)
    b3 = jnp.stack([bqkv[:C] * scale, bqkv[C:2 * C], bqkv[2 * C:]])
    b3 = b3.reshape(3, 1, C).astype(jnp.float32)                    # (3, 1, C)

    wproj = params["wproj"].astype(compute_dtype)                   # (C, C)
    bproj = params["bproj"].astype(jnp.float32).reshape(1, C)

    # ---- 0/1 head selector used for block-diag K/V and the denominators ----
    sel_np = (np.arange(HN)[:, None] // N) == (np.arange(C)[None, :] // head_dim)
    sel = jnp.asarray(sel_np, dtype=compute_dtype)                  # (H*N, C)

    # ---- grid sizing: minimal tail padding, >= 2 steps for v7x megacore ----
    bb_cap = max(1, min(block_b, B_))
    steps = max(min(B_, 2), pl.cdiv(B_, bb_cap))
    Bblk = pl.cdiv(B_, steps)
    Bp = int(steps) * int(Bblk)
    pad = Bp - B_

    x_c = x.astype(compute_dtype)
    if pad:
        x_c = jnp.pad(x_c, ((0, pad), (0, 0), (0, 0)))

    kernel = functools.partial(_window_attn_kernel, num_heads=num_heads)

    out = pl.pallas_call(
        kernel,
        out_shape=jax.ShapeDtypeStruct((Bp, N, C), out_dtype),
        grid_spec=pltpu.PrefetchScalarGridSpec(
            num_scalar_prefetch=0,
            grid=(int(steps),),
            in_specs=[
                pl.BlockSpec((int(Bblk), N, C), lambda b: (b, 0, 0)),     # x
                pl.BlockSpec((3, C, C), lambda b: (0, 0, 0)),             # w3
                pl.BlockSpec((3, 1, C), lambda b: (0, 0, 0)),             # b3
                pl.BlockSpec((N, HN), lambda b: (0, 0)),                  # bias
                pl.BlockSpec((HN, C), lambda b: (0, 0)),                  # sel
                pl.BlockSpec((C, C), lambda b: (0, 0)),                   # wproj
                pl.BlockSpec((1, C), lambda b: (0, 0)),                   # bproj
            ],
            out_specs=pl.BlockSpec((int(Bblk), N, C), lambda b: (b, 0, 0)),
        ),
        compiler_params=pltpu.CompilerParams(
            dimension_semantics=("parallel",),
            vmem_limit_bytes=_vmem_limit_bytes()),
    )(x_c, w3, b3, bias_packed, sel, wproj, bproj)

    return out[:B_] if pad else out


def _relative_position_index(window_size):
    """Same construction as the PyTorch module (numpy, host-side)."""
    D, Hh, W = window_size
    coords = np.stack(np.meshgrid(np.arange(D), np.arange(Hh), np.arange(W),
                                  indexing="ij"))                   # (3,D,H,W)
    coords_flatten = coords.reshape(3, -1)                          # (3, N)
    rel = coords_flatten[:, :, None] - coords_flatten[:, None, :]   # (3, N, N)
    rel = rel.transpose(1, 2, 0).astype(np.int64)                   # (N, N, 3)
    rel[:, :, 0] += D - 1
    rel[:, :, 1] += Hh - 1
    rel[:, :, 2] += W - 1
    rel[:, :, 0] *= (2 * Hh - 1) * (2 * W - 1)
    rel[:, :, 1] *= 2 * W - 1
    return jnp.asarray(rel.sum(-1), dtype=jnp.int32)                # (N, N)


def _init_params(key, dim, window_size, num_heads):
    D, Hh, W = window_size
    L = (2 * D - 1) * (2 * Hh - 1) * (2 * W - 1)
    k1, k2, k3, k4, k5, _ = jax.random.split(key, 6)
    return {
        # trunc_normal_(std=0.02) approximated by a plain normal * 0.02
        "rel_pos_bias_table": 0.02 * jax.random.normal(k1, (L, num_heads),
                                                       jnp.float32),
        "wqkv": 0.05 * jax.random.normal(k2, (dim, 3 * dim), jnp.float32),
        "bqkv": 0.05 * jax.random.normal(k3, (3 * dim,), jnp.float32),
        "wproj": 0.05 * jax.random.normal(k4, (dim, dim), jnp.float32),
        "bproj": 0.05 * jax.random.normal(k5, (dim,), jnp.float32),
    }


def _reference(x, params, window_size, num_heads):
    """Pure-JAX f32 reference of the PyTorch forward (mask=None)."""
    B_, N, C = x.shape
    hd = C // num_heads
    scale = hd ** (-0.5)
    qkv = x @ params["wqkv"] + params["bqkv"]
    qkv = qkv.reshape(B_, N, 3, num_heads, hd).transpose(2, 0, 3, 1, 4)
    q, k, v = qkv[0], qkv[1], qkv[2]
    q = q * scale
    attn = jnp.einsum("bhnd,bhmd->bhnm", q, k)
    idx = _relative_position_index(window_size)
    bias = params["rel_pos_bias_table"][idx.reshape(-1)].reshape(N, N, num_heads)
    bias = jnp.transpose(bias, (2, 0, 1))
    attn = attn + bias[None]
    attn = jax.nn.softmax(attn, axis=-1)
    out = jnp.einsum("bhnm,bhmd->bhnd", attn, v)
    out = out.transpose(0, 2, 1, 3).reshape(B_, N, C)
    return out @ params["wproj"] + params["bproj"]


if __name__ == "__main__":
    # Small config consistent with the module: C=32, window (2,4,4) -> N=32.
    dim = 32
    window_size = (2, 4, 4)
    num_heads = 4
    N = int(np.prod(window_size))
    B_ = 10  # num_windows * batch; deliberately not a multiple of block_b

    key = jax.random.PRNGKey(0)
    kx, kp = jax.random.split(key)
    x = jax.random.normal(kx, (B_, N, dim), jnp.float32)
    params = _init_params(kp, dim, window_size, num_heads)

    # block_b=4 -> 3 grid steps with a 2-window zero-padded tail (exercises
    # the multi-step "parallel" axis and tail handling at small test shapes;
    # production default is block_b=64).
    out = window_attention_3d(x, params, window_size, num_heads, block_b=4)
    out = jax.block_until_ready(out)

    ref = _reference(x, params, window_size, num_heads)
    np.testing.assert_allclose(np.asarray(out), np.asarray(ref),
                               rtol=2e-2, atol=2e-2)

    print("KERNEL_OK")
</pallas_src>

<mosaic_0001>
module attributes {stable_mosaic.version = 11 : i64} {
  func.func @_window_attn_kernel(%arg0: i32, %arg1: memref<4x32x32xbf16, #tpu.memory_space<vmem>>, %arg2: memref<3x32x32xbf16, #tpu.memory_space<vmem>>, %arg3: memref<3x1x32xf32, #tpu.memory_space<vmem>>, %arg4: memref<32x128xf32, #tpu.memory_space<vmem>>, %arg5: memref<128x32xbf16, #tpu.memory_space<vmem>>, %arg6: memref<32x32xbf16, #tpu.memory_space<vmem>>, %arg7: memref<1x32xf32, #tpu.memory_space<vmem>>, %arg8: memref<4x32x32xf32, #tpu.memory_space<vmem>>) attributes {dimension_semantics = [#tpu.dimension_semantics<parallel>], iteration_bounds = array<i64: 3>, scalar_prefetch = 0 : i64, scratch_operands = 0 : i64, tpu.core_type = #tpu.core_type<tc>, window_params = [{transform_indices = @transform_0, window_bounds = array<i64: 4, 32, 32>}, {pipeline_mode = #tpu.pipeline_mode<synchronous>, transform_indices = @transform_1, window_bounds = array<i64: 3, 32, 32>}, {pipeline_mode = #tpu.pipeline_mode<synchronous>, transform_indices = @transform_2, window_bounds = array<i64: 3, 1, 32>}, {pipeline_mode = #tpu.pipeline_mode<synchronous>, transform_indices = @transform_3, window_bounds = array<i64: 32, 128>}, {pipeline_mode = #tpu.pipeline_mode<synchronous>, transform_indices = @transform_4, window_bounds = array<i64: 128, 32>}, {pipeline_mode = #tpu.pipeline_mode<synchronous>, transform_indices = @transform_5, window_bounds = array<i64: 32, 32>}, {pipeline_mode = #tpu.pipeline_mode<synchronous>, transform_indices = @transform_6, window_bounds = array<i64: 1, 32>}, {transform_indices = @transform_7, window_bounds = array<i64: 4, 32, 32>}]} {
    %c0 = arith.constant 0 : index
    %c0_0 = arith.constant 0 : index
    %c0_1 = arith.constant 0 : index
    %0 = vector.load %arg1[%c0, %c0_0, %c0_1] : memref<4x32x32xbf16, #tpu.memory_space<vmem>>, vector<4x32x32xbf16>
    %1 = vector.shape_cast %0 : vector<4x32x32xbf16> to vector<128x32xbf16>
    %c0_2 = arith.constant 0 : index
    %c0_3 = arith.constant 0 : index
    %c0_4 = arith.constant 0 : index
    %2 = vector.load %arg2[%c0_2, %c0_3, %c0_4] : memref<3x32x32xbf16, #tpu.memory_space<vmem>>, vector<1x32x32xbf16>
    %3 = vector.shape_cast %2 : vector<1x32x32xbf16> to vector<32x32xbf16>
    %cst = arith.constant dense<0.000000e+00> : vector<128x32xf32>
    %4 = tpu.matmul %1, %3, %cst {dimension_numbers = #tpu.dot_dimension_numbers<[1], [0], [0], [1], [0, 0, 1, 1], [], []>} : vector<128x32xbf16>, vector<32x32xbf16>, vector<128x32xf32> -> vector<128x32xf32>
    %c0_5 = arith.constant 0 : index
    %c0_6 = arith.constant 0 : index
    %c0_7 = arith.constant 0 : index
    %5 = vector.load %arg3[%c0_5, %c0_6, %c0_7] : memref<3x1x32xf32, #tpu.memory_space<vmem>>, vector<1x1x32xf32>
    %6 = vector.shape_cast %5 : vector<1x1x32xf32> to vector<1x32xf32>
    %7 = vector.broadcast %6 : vector<1x32xf32> to vector<128x32xf32>
    %8 = arith.addf %4, %7 : vector<128x32xf32>
    %9 = arith.truncf %8 : vector<128x32xf32> to vector<128x32xbf16>
    %10 = vector.shape_cast %9 : vector<128x32xbf16> to vector<4x32x32xbf16>
    %c1 = arith.constant 1 : index
    %c0_8 = arith.constant 0 : index
    %c0_9 = arith.constant 0 : index
    %11 = vector.load %arg2[%c1, %c0_8, %c0_9] : memref<3x32x32xbf16, #tpu.memory_space<vmem>>, vector<1x32x32xbf16>
    %12 = vector.shape_cast %11 : vector<1x32x32xbf16> to vector<32x32xbf16>
    %cst_10 = arith.constant dense<0.000000e+00> : vector<128x32xf32>
    %13 = tpu.matmul %1, %12, %cst_10 {dimension_numbers = #tpu.dot_dimension_numbers<[1], [0], [0], [1], [0, 0, 1, 1], [], []>} : vector<128x32xbf16>, vector<32x32xbf16>, vector<128x32xf32> -> vector<128x32xf32>
    %c1_11 = arith.constant 1 : index
    %c0_12 = arith.constant 0 : index
    %c0_13 = arith.constant 0 : index
    %14 = vector.load %arg3[%c1_11, %c0_12, %c0_13] : memref<3x1x32xf32, #tpu.memory_space<vmem>>, vector<1x1x32xf32>
    %15 = vector.shape_cast %14 : vector<1x1x32xf32> to vector<1x32xf32>
    %16 = vector.broadcast %15 : vector<1x32xf32> to vector<128x32xf32>
    %17 = arith.addf %13, %16 : vector<128x32xf32>
    %18 = arith.truncf %17 : vector<128x32xf32> to vector<128x32xbf16>
    %19 = vector.shape_cast %18 : vector<128x32xbf16> to vector<4x32x32xbf16>
    %c2 = arith.constant 2 : index
    %c0_14 = arith.constant 0 : index
    %c0_15 = arith.constant 0 : index
    %20 = vector.load %arg2[%c2, %c0_14, %c0_15] : memref<3x32x32xbf16, #tpu.memory_space<vmem>>, vector<1x32x32xbf16>
    %21 = vector.shape_cast %20 : vector<1x32x32xbf16> to vector<32x32xbf16>
    %cst_16 = arith.constant dense<0.000000e+00> : vector<128x32xf32>
    %22 = tpu.matmul %1, %21, %cst_16 {dimension_numbers = #tpu.dot_dimension_numbers<[1], [0], [0], [1], [0, 0, 1, 1], [], []>} : vector<128x32xbf16>, vector<32x32xbf16>, vector<128x32xf32> -> vector<128x32xf32>
    %c2_17 = arith.constant 2 : index
    %c0_18 = arith.constant 0 : index
    %c0_19 = arith.constant 0 : index
    %23 = vector.load %arg3[%c2_17, %c0_18, %c0_19] : memref<3x1x32xf32, #tpu.memory_space<vmem>>, vector<1x1x32xf32>
    %24 = vector.shape_cast %23 : vector<1x1x32xf32> to vector<1x32xf32>
    %25 = vector.broadcast %24 : vector<1x32xf32> to vector<128x32xf32>
    %26 = arith.addf %22, %25 : vector<128x32xf32>
    %27 = arith.truncf %26 : vector<128x32xf32> to vector<128x32xbf16>
    %28 = vector.shape_cast %27 : vector<128x32xbf16> to vector<4x32x32xbf16>
    %c0_20 = arith.constant 0 : index
    %c0_21 = arith.constant 0 : index
    %29 = vector.load %arg5[%c0_20, %c0_21] : memref<128x32xbf16, #tpu.memory_space<vmem>>, vector<128x32xbf16>
    %30 = tpu.concatenate %19, %19, %19, %19 in 1 : vector<4x32x32xbf16>, vector<4x32x32xbf16>, vector<4x32x32xbf16>, vector<4x32x32xbf16> -> vector<4x128x32xbf16>
    %31 = vector.shape_cast %29 : vector<128x32xbf16> to vector<1x128x32xbf16>
    %32 = vector.broadcast %31 : vector<1x128x32xbf16> to vector<4x128x32xbf16>
    %33 = arith.mulf %30, %32 : vector<4x128x32xbf16>
    %34 = tpu.concatenate %28, %28, %28, %28 in 1 : vector<4x32x32xbf16>, vector<4x32x32xbf16>, vector<4x32x32xbf16>, vector<4x32x32xbf16> -> vector<4x128x32xbf16>
    %35 = vector.shape_cast %29 : vector<128x32xbf16> to vector<1x128x32xbf16>
    %36 = vector.broadcast %35 : vector<1x128x32xbf16> to vector<4x128x32xbf16>
    %37 = arith.mulf %34, %36 : vector<4x128x32xbf16>
    "tpu.trace_start"() <{level = 10 : i32, message = "bnc,bmc->bnm"}> : () -> ()
    %cst_22 = arith.constant dense<0.000000e+00> : vector<4x32x128xf32>
    %38 = tpu.matmul %10, %33, %cst_22 {dimension_numbers = #tpu.dot_dimension_numbers<[2], [2], [1], [1], [0, 0, 0, 1, 1, 1], [0], [0]>} : vector<4x32x32xbf16>, vector<4x128x32xbf16>, vector<4x32x128xf32> -> vector<4x32x128xf32>
    "tpu.trace_stop"() : () -> ()
    %c0_23 = arith.constant 0 : index
    %c0_24 = arith.constant 0 : index
    %39 = vector.load %arg4[%c0_23, %c0_24] : memref<32x128xf32, #tpu.memory_space<vmem>>, vector<32x128xf32>
    %40 = vector.shape_cast %39 : vector<32x128xf32> to vector<1x32x128xf32>
    %41 = vector.broadcast %40 : vector<1x32x128xf32> to vector<4x32x128xf32>
    %42 = arith.addf %38, %41 : vector<4x32x128xf32>
    %cst_25 = arith.constant dense<0xFF800000> : vector<4x32xf32>
    %43 = vector.multi_reduction <maximumf>, %42, %cst_25 [2] : vector<4x32x128xf32> to vector<4x32xf32>
    %44 = vector.shape_cast %43 : vector<4x32xf32> to vector<4x32x1xf32>
    %45 = vector.broadcast %44 : vector<4x32x1xf32> to vector<4x32x128xf32>
    %46 = arith.subf %42, %45 : vector<4x32x128xf32>
    %47 = math.exp %46 : vector<4x32x128xf32>
    %48 = arith.truncf %47 : vector<4x32x128xf32> to vector<4x32x128xbf16>
    %49 = vector.shape_cast %48 : vector<4x32x128xbf16> to vector<128x128xbf16>
    %cst_26 = arith.constant dense<0.000000e+00> : vector<128x32xf32>
    %50 = tpu.matmul %49, %29, %cst_26 {dimension_numbers = #tpu.dot_dimension_numbers<[1], [0], [0], [1], [0, 0, 1, 1], [], []>} : vector<128x128xbf16>, vector<128x32xbf16>, vector<128x32xf32> -> vector<128x32xf32>
    %51 = vector.shape_cast %50 : vector<128x32xf32> to vector<4x32x32xf32>
    %cst_27 = arith.constant 1.000000e-30 : f32
    %52 = vector.broadcast %cst_27 : f32 to vector<4x32x32xf32>
    %53 = arith.maximumf %51, %52 : vector<4x32x32xf32>
    "tpu.trace_start"() <{level = 10 : i32, message = "bnm,bmc->bnc"}> : () -> ()
    %cst_28 = arith.constant dense<0.000000e+00> : vector<4x32x32xf32>
    %54 = tpu.matmul %48, %37, %cst_28 {dimension_numbers = #tpu.dot_dimension_numbers<[2], [1], [1], [2], [0, 0, 0, 1, 1, 2], [0], [0]>} : vector<4x32x128xbf16>, vector<4x128x32xbf16>, vector<4x32x32xf32> -> vector<4x32x32xf32>
    "tpu.trace_stop"() : () -> ()
    %55 = tpu.reciprocal %53 {approx = true} : vector<4x32x32xf32> -> vector<4x32x32xf32>
    %56 = arith.mulf %54, %55 : vector<4x32x32xf32>
    %57 = vector.shape_cast %56 : vector<4x32x32xf32> to vector<128x32xf32>
    %58 = arith.truncf %57 : vector<128x32xf32> to vector<128x32xbf16>
    %c0_29 = arith.constant 0 : index
    %c0_30 = arith.constant 0 : index
    %59 = vector.load %arg6[%c0_29, %c0_30] : memref<32x32xbf16, #tpu.memory_space<vmem>>, vector<32x32xbf16>
    %cst_31 = arith.constant dense<0.000000e+00> : vector<128x32xf32>
    %60 = tpu.matmul %58, %59, %cst_31 {dimension_numbers = #tpu.dot_dimension_numbers<[1], [0], [0], [1], [0, 0, 1, 1], [], []>} : vector<128x32xbf16>, vector<32x32xbf16>, vector<128x32xf32> -> vector<128x32xf32>
    %c0_32 = arith.constant 0 : index
    %c0_33 = arith.constant 0 : index
    %61 = vector.load %arg7[%c0_32, %c0_33] : memref<1x32xf32, #tpu.memory_space<vmem>>, vector<1x32xf32>
    %62 = vector.shape_cast %61 : vector<1x32xf32> to vector<32xf32>
    %63 = vector.shape_cast %62 : vector<32xf32> to vector<1x32xf32>
    %64 = vector.broadcast %63 : vector<1x32xf32> to vector<128x32xf32>
    %65 = arith.addf %60, %64 : vector<128x32xf32>
    %66 = vector.shape_cast %65 : vector<128x32xf32> to vector<4x32x32xf32>
    %c0_34 = arith.constant 0 : index
    %c0_35 = arith.constant 0 : index
    %c0_36 = arith.constant 0 : index
    %67 = vector.load %arg8[%c0_34, %c0_35, %c0_36] : memref<4x32x32xf32, #tpu.memory_space<vmem>>, vector<4x32x32xf32>
    tpu.vector_store %arg8[%c0_34, %c0_35, %c0_36], %66 {strides = array<i32>} : memref<4x32x32xf32, #tpu.memory_space<vmem>>, vector<4x32x32xf32>,
    return
  }
  func.func @transform_0(%arg0: i32) -> (i32, i32, i32) {
    %c0_i32 = arith.constant 0 : i32
    %c0_i32_0 = arith.constant 0 : i32
    %c0_i32_1 = arith.constant 0 : i32
    return %arg0, %c0_i32, %c0_i32_0 : i32, i32, i32
  }
  func.func @transform_1(%arg0: i32) -> (i32, i32, i32) {
    %c0_i32 = arith.constant 0 : i32
    %c0_i32_0 = arith.constant 0 : i32
    %c0_i32_1 = arith.constant 0 : i32
    %c0_i32_2 = arith.constant 0 : i32
    return %c0_i32, %c0_i32_0, %c0_i32_1 : i32, i32, i32
  }
  func.func @transform_2(%arg0: i32) -> (i32, i32, i32) {
    %c0_i32 = arith.constant 0 : i32
    %c0_i32_0 = arith.constant 0 : i32
    %c0_i32_1 = arith.constant 0 : i32
    %c0_i32_2 = arith.constant 0 : i32
    return %c0_i32, %c0_i32_0, %c0_i32_1 : i32, i32, i32
  }
  func.func @transform_3(%arg0: i32) -> (i32, i32) {
    %c0_i32 = arith.constant 0 : i32
    %c0_i32_0 = arith.constant 0 : i32
    %c0_i32_1 = arith.constant 0 : i32
    return %c0_i32, %c0_i32_0 : i32, i32
  }
  func.func @transform_4(%arg0: i32) -> (i32, i32) {
    %c0_i32 = arith.constant 0 : i32
    %c0_i32_0 = arith.constant 0 : i32
    %c0_i32_1 = arith.constant 0 : i32
    return %c0_i32, %c0_i32_0 : i32, i32
  }
  func.func @transform_5(%arg0: i32) -> (i32, i32) {
    %c0_i32 = arith.constant 0 : i32
    %c0_i32_0 = arith.constant 0 : i32
    %c0_i32_1 = arith.constant 0 : i32
    return %c0_i32, %c0_i32_0 : i32, i32
  }
  func.func @transform_6(%arg0: i32) -> (i32, i32) {
    %c0_i32 = arith.constant 0 : i32
    %c0_i32_0 = arith.constant 0 : i32
    %c0_i32_1 = arith.constant 0 : i32
    return %c0_i32, %c0_i32_0 : i32, i32
  }
  func.func @transform_7(%arg0: i32) -> (i32, i32, i32) {
    %c0_i32 = arith.constant 0 : i32
    %c0_i32_0 = arith.constant 0 : i32
    %c0_i32_1 = arith.constant 0 : i32
    return %arg0, %c0_i32, %c0_i32_0 : i32, i32, i32
  }
}

</mosaic_0001>

<llo_original>
// kernel: tpu_custom_call.1
$region0: #{tpu_custom_call.1}
  #allocation0 [shape = 'u32[]', space=smem, size = 0x4, offset = 0x4, fixed_abs, tag = 'smem constant byte address 0x4 - core index']
  #allocation1 [shape = 'u32[144,128]{1,0:T(1,128)}', space=vmem, size = 0x12000, scoped, tag = 'internal scratch']
  %s0 = inlined_call_operand.hbm [shape: bf16[12,32,32], index: 0, kind: input, shape index: {}]
  %s1 = inlined_call_operand.vmem [shape: bf16[3,32,32], index: 1, kind: input, shape index: {}]
  %s2 = inlined_call_operand.vmem [shape: f32[3,1,32], index: 2, kind: input, shape index: {}]
  %s3 = inlined_call_operand.vmem [shape: f32[32,128], index: 3, kind: input, shape index: {}]
  %s4 = inlined_call_operand.vmem [shape: bf16[128,32], index: 4, kind: input, shape index: {}]
  %s5 = inlined_call_operand.hbm [shape: bf16[32,32], index: 5, kind: input, shape index: {}]
  %s6 = inlined_call_operand.vmem [shape: f32[1,32], index: 6, kind: input, shape index: {}]
  %s7 = inlined_call_operand.hbm [shape: f32[12,32,32], index: 7, kind: output, shape index: {}]
  %s8 = sld [smem:[#allocation0]]
  $region69: #{tpu_custom_call.1} parent=0
    _
  %s10 = ssub.s32 1, %s8
  %s11 = scalar_select 0, %s10, %s8
  $region1: #{tpu_custom_call.1} parent=0
    #allocation2 [shape = 'u8[65536]{0}', space=vmem, size = 0x10000, scoped, tag = 'input window, operand 0']
    #allocation3 [shape = 's32[2]{0}', space=sflag, size = 0x8, scoped, tag = 'scoped memory for tpu_custom_call.1']
    #allocation4 [shape = 's32[2]{0}', space=sflag, size = 0x8, scoped, tag = 'scoped memory for tpu_custom_call.1']
    #allocation5 [shape = 'u8[8192]{0}', space=vmem, size = 0x2000, scoped, tag = 'input window, operand 5, single buffered']
    #allocation6 [shape = 's32[1]{0}', space=sflag, size = 0x4, scoped, tag = 'scoped memory for tpu_custom_call.1']
    #allocation7 [shape = 'u8[131072]{0}', space=vmem, size = 0x20000, scoped, tag = 'output window, operand 0']
    %12 = vsyncpa [#allocation3], 0
    %s13 = scalar_lea.sflag [#allocation3], 1
    %14 = vsyncpa %s13, 0
    %15 = vsyncpa [#allocation6], 0
    %16 = vsyncpa [#allocation4], 0
    %s17 = scalar_lea.sflag [#allocation4], 1
    %18 = vsyncpa %s17, 0
    loop: start=0, step=1, limit=5
    $region2: #{tpu_custom_call.1} parent=1 // loop_pre_header
      _
    $region3: #{tpu_custom_call.1} parent=1 // loop_header
      %s20 = sphi 0, %s24
      %p21 = scmp.ge.s32.totalorder %s20, 5
      %s30 = sphi 0, %s32
      %s33 = sphi 0, %s30
      %s34 = sphi 0, %s33
      %s50 = sphi 0, %s34
      %s54 = sphi 0, %s54
      %s56 = sphi 0, %s54
      %s57 = sphi 0, %s56
      %s71 = sphi 0, %s57
      %s75 = sphi 0, %s75
      %s77 = sphi 0, %s75
      %s78 = sphi 0, %s77
      %s92 = sphi 0, %s78
      %s96 = sphi 0, %s96
      %s98 = sphi 0, %s96
      %s99 = sphi 0, %s98
      %s113 = sphi 0, %s99
      %s117 = sphi 0, %s117
      %s119 = sphi 0, %s117
      %s120 = sphi 0, %s119
      %s134 = sphi 0, %s120
      %s138 = sphi 0, %s138
      %s140 = sphi 0, %s138
      %s141 = sphi 0, %s140
      %s155 = sphi 0, %s141
      %s159 = sphi 0, %s159
      %s161 = sphi 0, %s159
      %s162 = sphi 0, %s161
      %s176 = sphi 0, %s162
      %s182 = sphi 0, %s184
      %s185 = sphi 0, %s182
      %s186 = sphi 0, %s185
      %s202 = sphi 0, %s186
    $region4: #{tpu_custom_call.1} parent=1 // loop_header_branch
      %23 = sbr.rel (%p21) target = $region8
    $region5: #{tpu_custom_call.1} parent=1 // loop_body
      %s25 = ssub.s32 %s20, 1
      %s26 = ssub.s32 %s20, 2
      %s27 = sadd.s32 %s20, 1
      %s28 = ssub.s32 %s20, %s27
      %p29 = scmp.eq.s32.totalorder %s28, 0
      %s31 = sadd.s32 %s30, 1
      %s32 = scalar_select %p29, %s30, %s31
      %p35 = pneg %p29
      %p36 = scmp.eq.s32.totalorder %s20, 2
      %p37 = por %p35, %p36
      %p38 = scmp.ne.s32.totalorder %s30, %s33
      %p39 = scmp.eq.s32.totalorder %s20, 0
      %p40 = por %p38, %p39
      %p41 = scmp.ne.s32.totalorder %s30, %s33
      %p42 = scmp.eq.s32.totalorder %s25, 2
      %p43 = por %p41, %p42
      %p44 = scmp.ne.s32.totalorder %s33, %s34
      %p45 = scmp.eq.s32.totalorder %s25, 0
      %p46 = por %p44, %p45
      %p47 = scmp.ne.s32.totalorder %s33, %s34
      %p48 = scmp.eq.s32.totalorder %s26, 2
      %p49 = por %p47, %p48
      %p51 = scmp.ne.s32.totalorder %s34, %s50
      %p52 = scmp.eq.s32.totalorder %s26, 0
      %p53 = por %p51, %p52
      %s55 = sadd.s32 %s54, 1
      %p58 = scmp.eq.s32.totalorder %s20, 2
      %p59 = scmp.ne.s32.totalorder %s54, %s56
      %p60 = scmp.eq.s32.totalorder %s20, 0
      %p61 = por %p59, %p60
      %p62 = scmp.ne.s32.totalorder %s54, %s56
      %p63 = scmp.eq.s32.totalorder %s25, 2
      %p64 = por %p62, %p63
      %p65 = scmp.ne.s32.totalorder %s56, %s57
      %p66 = scmp.eq.s32.totalorder %s25, 0
      %p67 = por %p65, %p66
      %p68 = scmp.ne.s32.totalorder %s56, %s57
      %p69 = scmp.eq.s32.totalorder %s26, 2
      %p70 = por %p68, %p69
      %p72 = scmp.ne.s32.totalorder %s57, %s71
      %p73 = scmp.eq.s32.totalorder %s26, 0
      %p74 = por %p72, %p73
      %s76 = sadd.s32 %s75, 1
      %p79 = scmp.eq.s32.totalorder %s20, 2
      %p80 = scmp.ne.s32.totalorder %s75, %s77
      %p81 = scmp.eq.s32.totalorder %s20, 0
      %p82 = por %p80, %p81
      %p83 = scmp.ne.s32.totalorder %s75, %s77
      %p84 = scmp.eq.s32.totalorder %s25, 2
      %p85 = por %p83, %p84
      %p86 = scmp.ne.s32.totalorder %s77, %s78
      %p87 = scmp.eq.s32.totalorder %s25, 0
      %p88 = por %p86, %p87
      %p89 = scmp.ne.s32.totalorder %s77, %s78
      %p90 = scmp.eq.s32.totalorder %s26, 2
      %p91 = por %p89, %p90
      %p93 = scmp.ne.s32.totalorder %s78, %s92
      %p94 = scmp.eq.s32.totalorder %s26, 0
      %p95 = por %p93, %p94
      %s97 = sadd.s32 %s96, 1
      %p100 = scmp.eq.s32.totalorder %s20, 2
      %p101 = scmp.ne.s32.totalorder %s96, %s98
      %p102 = scmp.eq.s32.totalorder %s20, 0
      %p103 = por %p101, %p102
      %p104 = scmp.ne.s32.totalorder %s96, %s98
      %p105 = scmp.eq.s32.totalorder %s25, 2
      %p106 = por %p104, %p105
      %p107 = scmp.ne.s32.totalorder %s98, %s99
      %p108 = scmp.eq.s32.totalorder %s25, 0
      %p109 = por %p107, %p108
      %p110 = scmp.ne.s32.totalorder %s98, %s99
      %p111 = scmp.eq.s32.totalorder %s26, 2
      %p112 = por %p110, %p111
      %p114 = scmp.ne.s32.totalorder %s99, %s113
      %p115 = scmp.eq.s32.totalorder %s26, 0
      %p116 = por %p114, %p115
      %s118 = sadd.s32 %s117, 1
      %p121 = scmp.eq.s32.totalorder %s20, 2
      %p122 = scmp.ne.s32.totalorder %s117, %s119
      %p123 = scmp.eq.s32.totalorder %s20, 0
      %p124 = por %p122, %p123
      %p125 = scmp.ne.s32.totalorder %s117, %s119
      %p126 = scmp.eq.s32.totalorder %s25, 2
      %p127 = por %p125, %p126
      %p128 = scmp.ne.s32.totalorder %s119, %s120
      %p129 = scmp.eq.s32.totalorder %s25, 0
      %p130 = por %p128, %p129
      %p131 = scmp.ne.s32.totalorder %s119, %s120
      %p132 = scmp.eq.s32.totalorder %s26, 2
      %p133 = por %p131, %p132
      %p135 = scmp.ne.s32.totalorder %s120, %s134
      %p136 = scmp.eq.s32.totalorder %s26, 0
      %p137 = por %p135, %p136
      %s139 = sadd.s32 %s138, 1
      %p142 = scmp.eq.s32.totalorder %s20, 2
      %p143 = scmp.ne.s32.totalorder %s138, %s140
      %p144 = scmp.eq.s32.totalorder %s20, 0
      %p145 = por %p143, %p144
      %p146 = scmp.ne.s32.totalorder %s138, %s140
      %p147 = scmp.eq.s32.totalorder %s25, 2
      %p148 = por %p146, %p147
      %p149 = scmp.ne.s32.totalorder %s140, %s141
      %p150 = scmp.eq.s32.totalorder %s25, 0
      %p151 = por %p149, %p150
      %p152 = scmp.ne.s32.totalorder %s140, %s141
      %p153 = scmp.eq.s32.totalorder %s26, 2
      %p154 = por %p152, %p153
      %p156 = scmp.ne.s32.totalorder %s141, %s155
      %p157 = scmp.eq.s32.totalorder %s26, 0
      %p158 = por %p156, %p157
      %s160 = sadd.s32 %s159, 1
      %p163 = scmp.eq.s32.totalorder %s20, 2
      %p164 = scmp.ne.s32.totalorder %s159, %s161
      %p165 = scmp.eq.s32.totalorder %s20, 0
      %p166 = por %p164, %p165
      %p167 = scmp.ne.s32.totalorder %s159, %s161
      %p168 = scmp.eq.s32.totalorder %s25, 2
      %p169 = por %p167, %p168
      %p170 = scmp.ne.s32.totalorder %s161, %s162
      %p171 = scmp.eq.s32.totalorder %s25, 0
      %p172 = por %p170, %p171
      %p173 = scmp.ne.s32.totalorder %s161, %s162
      %p174 = scmp.eq.s32.totalorder %s26, 2
      %p175 = por %p173, %p174
      %p177 = scmp.ne.s32.totalorder %s162, %s176
      %p178 = scmp.eq.s32.totalorder %s26, 0
      %p179 = por %p177, %p178
      %s180 = ssub.s32 %s20, %s27
      %p181 = scmp.eq.s32.totalorder %s180, 0
      %s183 = sadd.s32 %s182, 1
      %s184 = scalar_select %p181, %s182, %s183
      %p187 = pneg %p181
      %p188 = scmp.eq.s32.totalorder %s20, 2
      %p189 = por %p187, %p188
      %p190 = scmp.ne.s32.totalorder %s182, %s185
      %p191 = scmp.eq.s32.totalorder %s20, 0
      %p192 = por %p190, %p191
      %p193 = scmp.ne.s32.totalorder %s182, %s185
      %p194 = scmp.eq.s32.totalorder %s25, 2
      %p195 = por %p193, %p194
      %p196 = scmp.ne.s32.totalorder %s185, %s186
      %p197 = scmp.eq.s32.totalorder %s25, 0
      %p198 = por %p196, %p197
      %p199 = scmp.ne.s32.totalorder %s185, %s186
      %p200 = scmp.eq.s32.totalorder %s26, 2
      %p201 = por %p199, %p200
      %p203 = scmp.ne.s32.totalorder %s186, %s202
      %p204 = scmp.eq.s32.totalorder %s26, 0
      %p205 = por %p203, %p204
      %p206 = scmp.le.s32.totalorder 1, %s20
      %p207 = scmp.lt.s32.totalorder %s20, 4
      %p208 = pnand %p206, %p207
      %p209 = pneg %p208
      // Predicated region
      $region9: #{tpu_custom_call.1} parent=5 // pred_check
        _
      $region10: #{tpu_custom_call.1} parent=5 // pred_check_branch
        %211 = sbr.rel (%p208) target = $region12
      $region11: #{tpu_custom_call.1} parent=5 // pred_region
        %s212 = ssub.s32 %s20, 1
        // Predicated region
        $region13: #{tpu_custom_call.1} parent=11 // pred_check
          %p213 = pneg %p67
        $region14: #{tpu_custom_call.1} parent=11 // pred_check_branch
          %215 = sbr.rel (%p213) target = $region16
        $region15: #{tpu_custom_call.1} parent=11 // pred_region
          _
        $region16: #{tpu_custom_call.1} parent=11 // pred_fallthru
          _
        // Predicated region
        $region17: #{tpu_custom_call.1} parent=11 // pred_check
          %p216 = pneg %p88
        $region18: #{tpu_custom_call.1} parent=11 // pred_check_branch
          %218 = sbr.rel (%p216) target = $region20
        $region19: #{tpu_custom_call.1} parent=11 // pred_region
          _
        $region20: #{tpu_custom_call.1} parent=11 // pred_fallthru
          _
        // Predicated region
        $region21: #{tpu_custom_call.1} parent=11 // pred_check
          %p219 = pneg %p109
        $region22: #{tpu_custom_call.1} parent=11 // pred_check_branch
          %221 = sbr.rel (%p219) target = $region24
        $region23: #{tpu_custom_call.1} parent=11 // pred_region
          _
        $region24: #{tpu_custom_call.1} parent=11 // pred_fallthru
          _
        // Predicated region
        $region25: #{tpu_custom_call.1} parent=11 // pred_check
          %p222 = pneg %p130
        $region26: #{tpu_custom_call.1} parent=11 // pred_check_branch
          %224 = sbr.rel (%p222) target = $region28
        $region27: #{tpu_custom_call.1} parent=11 // pred_region
          _
        $region28: #{tpu_custom_call.1} parent=11 // pred_fallthru
          _
        // Predicated region
        $region29: #{tpu_custom_call.1} parent=11 // pred_check
          %p225 = pneg %p151
        $region30: #{tpu_custom_call.1} parent=11 // pred_check_branch
          %227 = sbr.rel (%p225) target = $region32
        $region31: #{tpu_custom_call.1} parent=11 // pred_region
          %s229 = ssub.s32 256, 256
          %230 = vsyncadd [#allocation6], %s229
          %s231 = sshll.u32 [#allocation5], 4
          %s232 = int_to_ptr.vmem [resolvable:$true] %s231
          %237 = dma.hbm_to_vmem [thread:$0]  %s5, 256, %s232, [#allocation6], 64, 64, 4
        $region32: #{tpu_custom_call.1} parent=11 // pred_fallthru
          _
        // Predicated region
        $region33: #{tpu_custom_call.1} parent=11 // pred_check
          %p238 = pneg %p172
        $region34: #{tpu_custom_call.1} parent=11 // pred_check_branch
          %240 = sbr.rel (%p238) target = $region36
        $region35: #{tpu_custom_call.1} parent=11 // pred_region
          _
        $region36: #{tpu_custom_call.1} parent=11 // pred_fallthru
          _
      $region12: #{tpu_custom_call.1} parent=5 // pred_fallthru
        _
      %p241 = scmp.lt.s32.totalorder %s20, 3
      // Predicated region
      $region37: #{tpu_custom_call.1} parent=5 // pred_check
        %p242 = pneg %p241
      $region38: #{tpu_custom_call.1} parent=5 // pred_check_branch
        %244 = sbr.rel (%p242) target = $region40
      $region39: #{tpu_custom_call.1} parent=5 // pred_region
        // Predicated region
        $region41: #{tpu_custom_call.1} parent=39 // pred_check
          %p245 = pneg %p40
        $region42: #{tpu_custom_call.1} parent=39 // pred_check_branch
          %247 = sbr.rel (%p245) target = $region44
        $region43: #{tpu_custom_call.1} parent=39 // pred_region
          %s248 = sand.u32 %s30, 1
          %s249 = scalar_lea.sflag [#allocation3], %s248
          %s250 = sand.u32 %s30, 1
          %s251 = smul.addr %s250, 64
          %s252 = scalar_lea.vmem [#allocation2], %s251
          %s253 = smul.u32 4, %s20
          %s255 = ssub.s32 1024, 1024
          %256 = vsyncadd %s249, %s255
          %s257 = smul.addr %s253, 4
          %s258 = smul.addr %s257, 64
          %s259 = scalar_lea.hbm %s0, %s258
          %s260 = sshll.u32 %s252, 4
          %s261 = int_to_ptr.vmem [resolvable:$true] %s260
          %266 = dma.hbm_to_vmem [thread:$0]  %s259, 1024, %s261, %s249, 64, 64, 4
        $region44: #{tpu_custom_call.1} parent=39 // pred_fallthru
          _
      $region40: #{tpu_custom_call.1} parent=5 // pred_fallthru
        _
      %p267 = scmp.le.s32.totalorder 1, %s20
      %p268 = scmp.lt.s32.totalorder %s20, 4
      %p269 = pnand %p267, %p268
      %p270 = pneg %p269
      // Predicated region
      $region45: #{tpu_custom_call.1} parent=5 // pred_check
        _
      $region46: #{tpu_custom_call.1} parent=5 // pred_check_branch
        %272 = sbr.rel (%p269) target = $region48
      $region47: #{tpu_custom_call.1} parent=5 // pred_region
        %s273 = ssub.s32 %s20, 1
        %s274 = sand.u32 %s33, 1
        %s275 = scalar_lea.sflag [#allocation3], %s274
        %s276 = sand.u32 %s33, 1
        %s277 = smul.addr %s276, 64
        %s278 = scalar_lea.vmem [#allocation2], %s277
        // Predicated region
        $region49: #{tpu_custom_call.1} parent=47 // pred_check
          %p279 = pneg %p46
        $region50: #{tpu_custom_call.1} parent=47 // pred_check_branch
          %281 = sbr.rel (%p279) target = $region52
        $region51: #{tpu_custom_call.1} parent=47 // pred_region
          %282 = dma.done %s275, 1024
        $region52: #{tpu_custom_call.1} parent=47 // pred_fallthru
          _
        // Predicated region
        $region53: #{tpu_custom_call.1} parent=47 // pred_check
          %p283 = pneg %p151
        $region54: #{tpu_custom_call.1} parent=47 // pred_check_branch
          %285 = sbr.rel (%p283) target = $region56
        $region55: #{tpu_custom_call.1} parent=47 // pred_region
          %286 = dma.done [#allocation6], 256
        $region56: #{tpu_custom_call.1} parent=47 // pred_fallthru
          _
        %s287 = sand.u32 %s33, 1
        %s288 = scalar_lea.sflag [#allocation3], %s287
        %s289 = sand.u32 %s33, 1
        %s290 = smul.addr %s289, 64
        %s291 = scalar_lea.vmem [#allocation2], %s290
        %p292 = pneg %p46
        %p293 = pneg %p43
        %p294 = pneg %p67
        %p295 = pneg %p64
        %p296 = pneg %p88
        %p297 = pneg %p85
        %p298 = pneg %p109
        %p299 = pneg %p106
        %p300 = pneg %p130
        %p301 = pneg %p127
        %p302 = pneg %p151
        %p303 = pneg %p148
        %p304 = pneg %p172
        %p305 = pneg %p169
        %p306 = pneg %p198
        %p307 = pneg %p195
        %s308 = sand.u32 %s185, 1
        %s309 = scalar_lea.sflag [#allocation4], %s308
        %s310 = sand.u32 %s185, 1
        %s311 = smul.addr %s310, 128
        %s312 = scalar_lea.vmem [#allocation7], %s311
        %s313 = smul.u32 4, %s25
        %s314 = smul.u32 4, %s25
        %v316 = vld [vmem:[%s278] sm:$0xf]
        %v317 = vld [vmem:[%s278 + $0x4] sm:$0xf]
        %v318 = vld [vmem:[%s278 + $0x8] sm:$0xf]
        %v319 = vld [vmem:[%s278 + $0xc] sm:$0xf]
        %v320 = vld [vmem:[%s278 + $0x10] sm:$0xf]
        %v321 = vld [vmem:[%s278 + $0x14] sm:$0xf]
        %v322 = vld [vmem:[%s278 + $0x18] sm:$0xf]
        %v323 = vld [vmem:[%s278 + $0x1c] sm:$0xf]
        %v324 = vld [vmem:[%s278 + $0x20] sm:$0xf]
        %v325 = vld [vmem:[%s278 + $0x24] sm:$0xf]
        %v326 = vld [vmem:[%s278 + $0x28] sm:$0xf]
        %v327 = vld [vmem:[%s278 + $0x2c] sm:$0xf]
        %v328 = vld [vmem:[%s278 + $0x30] sm:$0xf]
        %v329 = vld [vmem:[%s278 + $0x34] sm:$0xf]
        %v330 = vld [vmem:[%s278 + $0x38] sm:$0xf]
        %v331 = vld [vmem:[%s278 + $0x3c] sm:$0xf]
        %v332 = vld [vmem:[%s1] sm:$0xf]
        %v333 = vld [vmem:[%s1 + $0x4] sm:$0xf]
        %v334 = vld [vmem:[%s1 + $0x8] sm:$0xf]
        %v335 = vld [vmem:[%s1 + $0xc] sm:$0xf]
        %v336 = vld [vmem:[%s2] sm:$0x1]
        %v338 = vlaneseq
        %v339 = vshrl.u32 %v338, 7
        %v340 = vsub.s32 0, %v339
        %v341 = vrot.slane %v336, %v340
        %v359 = vunpack.c.l.b16 %v316
        %v360 = vunpack.c.l.b16 %v317
        %v361 = vunpack.c.l.b16 %v318
        %v362 = vunpack.c.l.b16 %v319
        %v363 = vunpack.c.l.b16 %v320
        %v364 = vunpack.c.l.b16 %v321
        %v365 = vunpack.c.l.b16 %v322
        %v366 = vunpack.c.l.b16 %v323
        %v367 = vunpack.c.l.b16 %v324
        %v368 = vunpack.c.l.b16 %v325
        %v369 = vunpack.c.l.b16 %v326
        %v370 = vunpack.c.l.b16 %v327
        %v371 = vunpack.c.l.b16 %v328
        %v372 = vunpack.c.l.b16 %v329
        %v373 = vunpack.c.l.b16 %v330
        %v374 = vunpack.c.l.b16 %v331
        %v375 = vpack.c.b16 %v360, %v359
        %v376 = vpack.c.b16 %v362, %v361
        %v377 = vpack.c.b16 %v364, %v363
        %v378 = vpack.c.b16 %v366, %v365
        %v379 = vpack.c.b16 %v368, %v367
        %v380 = vpack.c.b16 %v370, %v369
        %v381 = vpack.c.b16 %v372, %v371
        %v382 = vpack.c.b16 %v374, %v373
        %v387 = vunpack.c.l.b16 %v332
        %v388 = vunpack.c.l.b16 %v333
        %v389 = vunpack.c.l.b16 %v334
        %v390 = vunpack.c.l.b16 %v335
        %v391 = vpack.c.b16 %v388, %v387
        %v392 = vpack.c.b16 %v390, %v389
        %vm395 = vcmask 261120
        %v397 = vsel %vm395, %v375, 0
        %v400 = vsel %vm395, %v376, 0
        %v403 = vsel %vm395, %v377, 0
        %v406 = vsel %vm395, %v378, 0
        %v409 = vsel %vm395, %v379, 0
        %v412 = vsel %vm395, %v380, 0
        %v415 = vsel %vm395, %v381, 0
        %v418 = vsel %vm395, %v382, 0
        %420 = vmatprep.subr.bf16.mxu0 0
        %421 = vmatpush1.bf16.msra.mxu0 0
        %422 = vmatprep.subr.bf16.mxu0 0
        %423 = vmatpush1.bf16.msra.mxu0 0
        %424 = vmatprep.subr.bf16.mxu0 0
        %425 = vmatpush1.bf16.msra.mxu0 0
        %426 = vmatprep.subr.bf16.mxu0 0
        %427 = vmatpush1.bf16.msra.mxu0 0
        %428 = vmatprep.subr.bf16.mxu0 0
        %429 = vmatpush1.bf16.msra.mxu0 0
        %430 = vmatprep.subr.bf16.mxu0 0
        %431 = vmatpush1.bf16.msra.mxu0 0
        %432 = vmatprep.subr.bf16.mxu0 0
        %433 = vmatpush1.bf16.msra.mxu0 %v392
        %434 = vmatprep.subr.bf16.mxu0 0
        %435 = vmatpush1.bf16.msra.mxu0 %v391
        %436 = vmatprep.subr.bf16.mxu0 0
        %437 = vmatpush2.bf16.msra.mxu0 0
        %438 = vmatprep.subr.bf16.mxu0 0
        %439 = vmatpush2.bf16.msra.mxu0 0
        %440 = vmatprep.subr.bf16.mxu0 0
        %441 = vmatpush2.bf16.msra.mxu0 0
        %442 = vmatprep.subr.bf16.mxu0 0
        %443 = vmatpush2.bf16.msra.mxu0 0
        %444 = vmatprep.subr.bf16.mxu0 0
        %445 = vmatpush2.bf16.msra.mxu0 0
        %446 = vmatprep.subr.bf16.mxu0 0
        %447 = vmatpush2.bf16.msra.mxu0 0
        %448 = vmatprep.subr.bf16.mxu0 0
        %449 = vmatpush2.bf16.msra.mxu0 0
        %450 = vmatprep.subr.bf16.mxu0 0
        %451 = vmatpush2.bf16.msra.mxu0 0
        %452 = vmatprep.mubr.bf16.mxu0 0
        %453 = vmatmul.mubr.bf16.gmra.mxu0 %v397
        %v454 = vpop.f32.mrf.mxu0
        %v455 = vadd.f32 %v341, %v454
        %v456 = vpop.f32.mrf.mxu0
        %v457 = vpop.f32.mrf.mxu0
        %v458 = vadd.f32 %v341, %v457
        %v459 = vpop.f32.mrf.mxu0
        %460 = vmatprep.mubr.bf16.mxu0 0
        %461 = vmatmul.mubr.bf16.gmra.mxu0 %v400
        %v462 = vpop.f32.mrf.mxu0
        %v463 = vadd.f32 %v341, %v462
        %v464 = vpop.f32.mrf.mxu0
        %v465 = vpop.f32.mrf.mxu0
        %v466 = vadd.f32 %v341, %v465
        %v467 = vpop.f32.mrf.mxu0
        %468 = vmatprep.mubr.bf16.mxu0 0
        %469 = vmatmul.mubr.bf16.gmra.mxu0 %v403
        %v470 = vpop.f32.mrf.mxu0
        %v471 = vadd.f32 %v341, %v470
        %v472 = vpop.f32.mrf.mxu0
        %v473 = vpop.f32.mrf.mxu0
        %v474 = vadd.f32 %v341, %v473
        %v475 = vpop.f32.mrf.mxu0
        %476 = vmatprep.mubr.bf16.mxu0 0
        %477 = vmatmul.mubr.bf16.gmra.mxu0 %v406
        %v478 = vpop.f32.mrf.mxu0
        %v479 = vadd.f32 %v341, %v478
        %v480 = vpop.f32.mrf.mxu0
        %v481 = vpop.f32.mrf.mxu0
        %v482 = vadd.f32 %v341, %v481
        %v483 = vpop.f32.mrf.mxu0
        %484 = vmatprep.mubr.bf16.mxu0 0
        %485 = vmatmul.mubr.bf16.gmra.mxu0 %v409
        %v486 = vpop.f32.mrf.mxu0
        %v487 = vadd.f32 %v341, %v486
        %v488 = vpop.f32.mrf.mxu0
        %v489 = vpop.f32.mrf.mxu0
        %v490 = vadd.f32 %v341, %v489
        %v491 = vpop.f32.mrf.mxu0
        %492 = vmatprep.mubr.bf16.mxu0 0
        %493 = vmatmul.mubr.bf16.gmra.mxu0 %v412
        %v494 = vpop.f32.mrf.mxu0
        %v495 = vadd.f32 %v341, %v494
        %v496 = vpop.f32.mrf.mxu0
        %v497 = vpop.f32.mrf.mxu0
        %v498 = vadd.f32 %v341, %v497
        %v499 = vpop.f32.mrf.mxu0
        %500 = vmatprep.mubr.bf16.mxu0 0
        %501 = vmatmul.mubr.bf16.gmra.mxu0 %v415
        %v502 = vpop.f32.mrf.mxu0
        %v503 = vadd.f32 %v341, %v502
        %v504 = vpop.f32.mrf.mxu0
        %v505 = vpop.f32.mrf.mxu0
        %v506 = vadd.f32 %v341, %v505
        %v507 = vpop.f32.mrf.mxu0
        %508 = vmatprep.mubr.bf16.mxu0 0
        %509 = vmatmul.mubr.bf16.gmra.mxu0 %v418
        %v510 = vpop.f32.mrf.mxu0
        %v511 = vadd.f32 %v341, %v510
        %v512 = vpop.f32.mrf.mxu0
        %v513 = vpop.f32.mrf.mxu0
        %v514 = vadd.f32 %v341, %v513
        %v515 = vpop.f32.mrf.mxu0
        %516 = vdwg.mxu0
        %v517 = vpack.c.bf16 %v458, %v455
        %v518 = vpack.c.bf16 %v466, %v463
        %v519 = vpack.c.bf16 %v474, %v471
        %v520 = vpack.c.bf16 %v482, %v479
        %v521 = vpack.c.bf16 %v490, %v487
        %v522 = vpack.c.bf16 %v498, %v495
        %v523 = vpack.c.bf16 %v506, %v503
        %v524 = vpack.c.bf16 %v514, %v511
        %s525 = scalar_lea.vmem %s1, 16
        %v526 = vld [vmem:[%s525] sm:$0xf]
        %v527 = vld [vmem:[%s525 + $0x4] sm:$0xf]
        %v528 = vld [vmem:[%s525 + $0x8] sm:$0xf]
        %v529 = vld [vmem:[%s525 + $0xc] sm:$0xf]
        %s530 = scalar_lea.vmem %s2, 1
        %v531 = vld [vmem:[%s530] sm:$0x1]
        %v533 = vlaneseq
        %v534 = vshrl.u32 %v533, 7
        %v535 = vsub.s32 0, %v534
        %v536 = vrot.slane %v531, %v535
        %v542 = vunpack.c.l.b16 %v526
        %v543 = vunpack.c.l.b16 %v527
        %v544 = vunpack.c.l.b16 %v528
        %v545 = vunpack.c.l.b16 %v529
        %v546 = vpack.c.b16 %v543, %v542
        %v547 = vpack.c.b16 %v545, %v544
        %550 = vmatprep.subr.bf16.mxu0 0
        %551 = vmatpush1.bf16.msra.mxu0 0
        %552 = vmatprep.subr.bf16.mxu0 0
        %553 = vmatpush1.bf16.msra.mxu0 0
        %554 = vmatprep.subr.bf16.mxu0 0
        %555 = vmatpush1.bf16.msra.mxu0 0
        %556 = vmatprep.subr.bf16.mxu0 0
        %557 = vmatpush1.bf16.msra.mxu0 0
        %558 = vmatprep.subr.bf16.mxu0 0
        %559 = vmatpush1.bf16.msra.mxu0 0
        %560 = vmatprep.subr.bf16.mxu0 0
        %561 = vmatpush1.bf16.msra.mxu0 0
        %562 = vmatprep.subr.bf16.mxu0 0
        %563 = vmatpush1.bf16.msra.mxu0 %v547
        %564 = vmatprep.subr.bf16.mxu0 0
        %565 = vmatpush1.bf16.msra.mxu0 %v546
        %566 = vmatprep.subr.bf16.mxu0 0
        %567 = vmatpush2.bf16.msra.mxu0 0
        %568 = vmatprep.subr.bf16.mxu0 0
        %569 = vmatpush2.bf16.msra.mxu0 0
        %570 = vmatprep.subr.bf16.mxu0 0
        %571 = vmatpush2.bf16.msra.mxu0 0
        %572 = vmatprep.subr.bf16.mxu0 0
        %573 = vmatpush2.bf16.msra.mxu0 0
        %574 = vmatprep.subr.bf16.mxu0 0
        %575 = vmatpush2.bf16.msra.mxu0 0
        %576 = vmatprep.subr.bf16.mxu0 0
        %577 = vmatpush2.bf16.msra.mxu0 0
        %578 = vmatprep.subr.bf16.mxu0 0
        %579 = vmatpush2.bf16.msra.mxu0 0
        %580 = vmatprep.subr.bf16.mxu0 0
        %581 = vmatpush2.bf16.msra.mxu0 0
        %582 = vmatprep.mubr.bf16.mxu0 0
        %583 = vmatmul.mubr.bf16.gmra.mxu0 %v397
        %v584 = vpop.f32.mrf.mxu0
        %v585 = vadd.f32 %v536, %v584
        %v586 = vpop.f32.mrf.mxu0
        %v587 = vpop.f32.mrf.mxu0
        %v588 = vadd.f32 %v536, %v587
        %v589 = vpop.f32.mrf.mxu0
        %590 = vmatprep.mubr.bf16.mxu0 0
        %591 = vmatmul.mubr.bf16.gmra.mxu0 %v400
        %v592 = vpop.f32.mrf.mxu0
        %v593 = vadd.f32 %v536, %v592
        %v594 = vpop.f32.mrf.mxu0
        %v595 = vpop.f32.mrf.mxu0
        %v596 = vadd.f32 %v536, %v595
        %v597 = vpop.f32.mrf.mxu0
        %598 = vmatprep.mubr.bf16.mxu0 0
        %599 = vmatmul.mubr.bf16.gmra.mxu0 %v403
        %v600 = vpop.f32.mrf.mxu0
        %v601 = vadd.f32 %v536, %v600
        %v602 = vpop.f32.mrf.mxu0
        %v603 = vpop.f32.mrf.mxu0
        %v604 = vadd.f32 %v536, %v603
        %v605 = vpop.f32.mrf.mxu0
        %606 = vmatprep.mubr.bf16.mxu0 0
        %607 = vmatmul.mubr.bf16.gmra.mxu0 %v406
        %v608 = vpop.f32.mrf.mxu0
        %v609 = vadd.f32 %v536, %v608
        %v610 = vpop.f32.mrf.mxu0
        %v611 = vpop.f32.mrf.mxu0
        %v612 = vadd.f32 %v536, %v611
        %v613 = vpop.f32.mrf.mxu0
        %614 = vmatprep.mubr.bf16.mxu0 0
        %615 = vmatmul.mubr.bf16.gmra.mxu0 %v409
        %v616 = vpop.f32.mrf.mxu0
        %v617 = vadd.f32 %v536, %v616
        %v618 = vpop.f32.mrf.mxu0
        %v619 = vpop.f32.mrf.mxu0
        %v620 = vadd.f32 %v536, %v619
        %v621 = vpop.f32.mrf.mxu0
        %622 = vmatprep.mubr.bf16.mxu0 0
        %623 = vmatmul.mubr.bf16.gmra.mxu0 %v412
        %v624 = vpop.f32.mrf.mxu0
        %v625 = vadd.f32 %v536, %v624
        %v626 = vpop.f32.mrf.mxu0
        %v627 = vpop.f32.mrf.mxu0
        %v628 = vadd.f32 %v536, %v627
        %v629 = vpop.f32.mrf.mxu0
        %630 = vmatprep.mubr.bf16.mxu0 0
        %631 = vmatmul.mubr.bf16.gmra.mxu0 %v415
        %v632 = vpop.f32.mrf.mxu0
        %v633 = vadd.f32 %v536, %v632
        %v634 = vpop.f32.mrf.mxu0
        %v635 = vpop.f32.mrf.mxu0
        %v636 = vadd.f32 %v536, %v635
        %v637 = vpop.f32.mrf.mxu0
        %638 = vmatprep.mubr.bf16.mxu0 0
        %639 = vmatmul.mubr.bf16.gmra.mxu0 %v418
        %v640 = vpop.f32.mrf.mxu0
        %v641 = vadd.f32 %v536, %v640
        %v642 = vpop.f32.mrf.mxu0
        %v643 = vpop.f32.mrf.mxu0
        %v644 = vadd.f32 %v536, %v643
        %v645 = vpop.f32.mrf.mxu0
        %646 = vdwg.mxu0
        %v647 = vpack.c.bf16 %v588, %v585
        %v648 = vpack.c.bf16 %v596, %v593
        %v649 = vpack.c.bf16 %v604, %v601
        %v650 = vpack.c.bf16 %v612, %v609
        %v651 = vpack.c.bf16 %v620, %v617
        %v652 = vpack.c.bf16 %v628, %v625
        %v653 = vpack.c.bf16 %v636, %v633
        %v654 = vpack.c.bf16 %v644, %v641
        %s655 = scalar_lea.vmem %s1, 32
        %v656 = vld [vmem:[%s655] sm:$0xf]
        %v657 = vld [vmem:[%s655 + $0x4] sm:$0xf]
        %v658 = vld [vmem:[%s655 + $0x8] sm:$0xf]
        %v659 = vld [vmem:[%s655 + $0xc] sm:$0xf]
        %s660 = scalar_lea.vmem %s2, 2
        %v661 = vld [vmem:[%s660] sm:$0x1]
        %v663 = vlaneseq
        %v664 = vshrl.u32 %v663, 7
        %v665 = vsub.s32 0, %v664
        %v666 = vrot.slane %v661, %v665
        %v672 = vunpack.c.l.b16 %v656
        %v673 = vunpack.c.l.b16 %v657
        %v674 = vunpack.c.l.b16 %v658
        %v675 = vunpack.c.l.b16 %v659
        %v676 = vpack.c.b16 %v673, %v672
        %v677 = vpack.c.b16 %v675, %v674
        %680 = vmatprep.subr.bf16.mxu0 0
        %681 = vmatpush1.bf16.msra.mxu0 0
        %682 = vmatprep.subr.bf16.mxu0 0
        %683 = vmatpush1.bf16.msra.mxu0 0
        %684 = vmatprep.subr.bf16.mxu0 0
        %685 = vmatpush1.bf16.msra.mxu0 0
        %686 = vmatprep.subr.bf16.mxu0 0
        %687 = vmatpush1.bf16.msra.mxu0 0
        %688 = vmatprep.subr.bf16.mxu0 0
        %689 = vmatpush1.bf16.msra.mxu0 0
        %690 = vmatprep.subr.bf16.mxu0 0
        %691 = vmatpush1.bf16.msra.mxu0 0
        %692 = vmatprep.subr.bf16.mxu0 0
        %693 = vmatpush1.bf16.msra.mxu0 %v677
        %694 = vmatprep.subr.bf16.mxu0 0
        %695 = vmatpush1.bf16.msra.mxu0 %v676
        %696 = vmatprep.subr.bf16.mxu0 0
        %697 = vmatpush2.bf16.msra.mxu0 0
        %698 = vmatprep.subr.bf16.mxu0 0
        %699 = vmatpush2.bf16.msra.mxu0 0
        %700 = vmatprep.subr.bf16.mxu0 0
        %701 = vmatpush2.bf16.msra.mxu0 0
        %702 = vmatprep.subr.bf16.mxu0 0
        %703 = vmatpush2.bf16.msra.mxu0 0
        %704 = vmatprep.subr.bf16.mxu0 0
        %705 = vmatpush2.bf16.msra.mxu0 0
        %706 = vmatprep.subr.bf16.mxu0 0
        %707 = vmatpush2.bf16.msra.mxu0 0
        %708 = vmatprep.subr.bf16.mxu0 0
        %709 = vmatpush2.bf16.msra.mxu0 0
        %710 = vmatprep.subr.bf16.mxu0 0
        %711 = vmatpush2.bf16.msra.mxu0 0
        %712 = vmatprep.mubr.bf16.mxu0 0
        %713 = vmatmul.mubr.bf16.gmra.mxu0 %v397
        %v714 = vpop.f32.mrf.mxu0
        %v715 = vadd.f32 %v666, %v714
        %v716 = vpop.f32.mrf.mxu0
        %v717 = vpop.f32.mrf.mxu0
        %v718 = vadd.f32 %v666, %v717
        %v719 = vpop.f32.mrf.mxu0
        %720 = vmatprep.mubr.bf16.mxu0 0
        %721 = vmatmul.mubr.bf16.gmra.mxu0 %v400
        %v722 = vpop.f32.mrf.mxu0
        %v723 = vadd.f32 %v666, %v722
        %v724 = vpop.f32.mrf.mxu0
        %v725 = vpop.f32.mrf.mxu0
        %v726 = vadd.f32 %v666, %v725
        %v727 = vpop.f32.mrf.mxu0
        %728 = vmatprep.mubr.bf16.mxu0 0
        %729 = vmatmul.mubr.bf16.gmra.mxu0 %v403
        %v730 = vpop.f32.mrf.mxu0
        %v731 = vadd.f32 %v666, %v730
        %v732 = vpop.f32.mrf.mxu0
        %v733 = vpop.f32.mrf.mxu0
        %v734 = vadd.f32 %v666, %v733
        %v735 = vpop.f32.mrf.mxu0
        %736 = vmatprep.mubr.bf16.mxu0 0
        %737 = vmatmul.mubr.bf16.gmra.mxu0 %v406
        %v738 = vpop.f32.mrf.mxu0
        %v739 = vadd.f32 %v666, %v738
        %v740 = vpop.f32.mrf.mxu0
        %v741 = vpop.f32.mrf.mxu0
        %v742 = vadd.f32 %v666, %v741
        %v743 = vpop.f32.mrf.mxu0
        %744 = vmatprep.mubr.bf16.mxu0 0
        %745 = vmatmul.mubr.bf16.gmra.mxu0 %v409
        %v746 = vpop.f32.mrf.mxu0
        %v747 = vadd.f32 %v666, %v746
        %v748 = vpop.f32.mrf.mxu0
        %v749 = vpop.f32.mrf.mxu0
        %v750 = vadd.f32 %v666, %v749
        %v751 = vpop.f32.mrf.mxu0
        %752 = vmatprep.mubr.bf16.mxu0 0
        %753 = vmatmul.mubr.bf16.gmra.mxu0 %v412
        %v754 = vpop.f32.mrf.mxu0
        %v755 = vadd.f32 %v666, %v754
        %v756 = vpop.f32.mrf.mxu0
        %v757 = vpop.f32.mrf.mxu0
        %v758 = vadd.f32 %v666, %v757
        %v759 = vpop.f32.mrf.mxu0
        %760 = vmatprep.mubr.bf16.mxu0 0
        %761 = vmatmul.mubr.bf16.gmra.mxu0 %v415
        %v762 = vpop.f32.mrf.mxu0
        %v763 = vadd.f32 %v666, %v762
        %v764 = vpop.f32.mrf.mxu0
        %v765 = vpop.f32.mrf.mxu0
        %v766 = vadd.f32 %v666, %v765
        %v767 = vpop.f32.mrf.mxu0
        %768 = vmatprep.mubr.bf16.mxu0 0
        %769 = vmatmul.mubr.bf16.gmra.mxu0 %v418
        %v770 = vpop.f32.mrf.mxu0
        %v771 = vadd.f32 %v666, %v770
        %v772 = vpop.f32.mrf.mxu0
        %v773 = vpop.f32.mrf.mxu0
        %v774 = vadd.f32 %v666, %v773
        %v775 = vpop.f32.mrf.mxu0
        %776 = vdwg.mxu0
        %v777 = vpack.c.bf16 %v718, %v715
        %v778 = vpack.c.bf16 %v726, %v723
        %v779 = vpack.c.bf16 %v734, %v731
        %v780 = vpack.c.bf16 %v742, %v739
        %v781 = vpack.c.bf16 %v750, %v747
        %v782 = vpack.c.bf16 %v758, %v755
        %v783 = vpack.c.bf16 %v766, %v763
        %v784 = vpack.c.bf16 %v774, %v771
        %v785 = vld [vmem:[%s4] sm:$0xf]
        %v786 = vld [vmem:[%s4 + $0x4] sm:$0xf]
        %v787 = vld [vmem:[%s4 + $0x8] sm:$0xf]
        %v788 = vld [vmem:[%s4 + $0xc] sm:$0xf]
        %v789 = vld [vmem:[%s4 + $0x10] sm:$0xf]
        %v790 = vld [vmem:[%s4 + $0x14] sm:$0xf]
        %v791 = vld [vmem:[%s4 + $0x18] sm:$0xf]
        %v792 = vld [vmem:[%s4 + $0x1c] sm:$0xf]
        %v793 = vld [vmem:[%s4 + $0x20] sm:$0xf]
        %v794 = vld [vmem:[%s4 + $0x24] sm:$0xf]
        %v795 = vld [vmem:[%s4 + $0x28] sm:$0xf]
        %v796 = vld [vmem:[%s4 + $0x2c] sm:$0xf]
        %v797 = vld [vmem:[%s4 + $0x30] sm:$0xf]
        %v798 = vld [vmem:[%s4 + $0x34] sm:$0xf]
        %v799 = vld [vmem:[%s4 + $0x38] sm:$0xf]
        %v800 = vld [vmem:[%s4 + $0x3c] sm:$0xf]
        %v817 = vunpack.c.l.b16 %v785
        %v818 = vunpack.c.l.b16 %v786
        %v819 = vunpack.c.l.b16 %v787
        %v820 = vunpack.c.l.b16 %v788
        %v821 = vunpack.c.l.b16 %v789
        %v822 = vunpack.c.l.b16 %v790
        %v823 = vunpack.c.l.b16 %v791
        %v824 = vunpack.c.l.b16 %v792
        %v825 = vunpack.c.l.b16 %v793
        %v826 = vunpack.c.l.b16 %v794
        %v827 = vunpack.c.l.b16 %v795
        %v828 = vunpack.c.l.b16 %v796
        %v829 = vunpack.c.l.b16 %v797
        %v830 = vunpack.c.l.b16 %v798
        %v831 = vunpack.c.l.b16 %v799
        %v832 = vunpack.c.l.b16 %v800
        %v833 = vpack.c.b16 %v818, %v817
        %v834 = vpack.c.b16 %v820, %v819
        %v835 = vpack.c.b16 %v822, %v821
        %v836 = vpack.c.b16 %v824, %v823
        %v837 = vpack.c.b16 %v826, %v825
        %v838 = vpack.c.b16 %v828, %v827
        %v839 = vpack.c.b16 %v830, %v829
        %v840 = vpack.c.b16 %v832, %v831
        %v849 = vmul.bf16 %v647, %v833
        %v850 = vmul.bf16 %v648, %v834
        %v851 = vmul.bf16 %v647, %v835
        %v852 = vmul.bf16 %v648, %v836
        %v853 = vmul.bf16 %v647, %v837
        %v854 = vmul.bf16 %v648, %v838
        %v855 = vmul.bf16 %v647, %v839
        %v856 = vmul.bf16 %v648, %v840
        %v857 = vmul.bf16 %v649, %v833
        %v858 = vmul.bf16 %v650, %v834
        %v859 = vmul.bf16 %v649, %v835
        %v860 = vmul.bf16 %v650, %v836
        %v861 = vmul.bf16 %v649, %v837
        %v862 = vmul.bf16 %v650, %v838
        %v863 = vmul.bf16 %v649, %v839
        %v864 = vmul.bf16 %v650, %v840
        %v865 = vmul.bf16 %v651, %v833
        %v866 = vmul.bf16 %v652, %v834
        %v867 = vmul.bf16 %v651, %v835
        %v868 = vmul.bf16 %v652, %v836
        %v869 = vmul.bf16 %v651, %v837
        %v870 = vmul.bf16 %v652, %v838
        %v871 = vmul.bf16 %v651, %v839
        %v872 = vmul.bf16 %v652, %v840
        %v873 = vmul.bf16 %v653, %v833
        %v874 = vmul.bf16 %v654, %v834
        %v875 = vmul.bf16 %v653, %v835
        %v876 = vmul.bf16 %v654, %v836
        %v877 = vmul.bf16 %v653, %v837
        %v878 = vmul.bf16 %v654, %v838
        %v879 = vmul.bf16 %v653, %v839
        %v880 = vmul.bf16 %v654, %v840
        %v881 = vmul.bf16 %v777, %v833
        %v882 = vmul.bf16 %v778, %v834
        %v883 = vmul.bf16 %v777, %v835
        %v884 = vmul.bf16 %v778, %v836
        %v885 = vmul.bf16 %v777, %v837
        %v886 = vmul.bf16 %v778, %v838
        %v887 = vmul.bf16 %v777, %v839
        %v888 = vmul.bf16 %v778, %v840
        %v889 = vmul.bf16 %v779, %v833
        %v890 = vmul.bf16 %v780, %v834
        %v891 = vmul.bf16 %v779, %v835
        %v892 = vmul.bf16 %v780, %v836
        %v893 = vmul.bf16 %v779, %v837
        %v894 = vmul.bf16 %v780, %v838
        %v895 = vmul.bf16 %v779, %v839
        %v896 = vmul.bf16 %v780, %v840
        %v897 = vmul.bf16 %v781, %v833
        %v898 = vmul.bf16 %v782, %v834
        %v899 = vmul.bf16 %v781, %v835
        %v900 = vmul.bf16 %v782, %v836
        %v901 = vmul.bf16 %v781, %v837
        %v902 = vmul.bf16 %v782, %v838
        %v903 = vmul.bf16 %v781, %v839
        %v904 = vmul.bf16 %v782, %v840
        %v905 = vmul.bf16 %v783, %v833
        %v906 = vmul.bf16 %v784, %v834
        %v907 = vmul.bf16 %v783, %v835
        %v908 = vmul.bf16 %v784, %v836
        %v909 = vmul.bf16 %v783, %v837
        %v910 = vmul.bf16 %v784, %v838
        %v911 = vmul.bf16 %v783, %v839
        %v912 = vmul.bf16 %v784, %v840
        %v913 = vld [vmem:[%s3] sm:$0xff]
        %v914 = vld [vmem:[%s3 + $0x8] sm:$0xff]
        %v915 = vld [vmem:[%s3 + $0x10] sm:$0xff]
        %v916 = vld [vmem:[%s3 + $0x18] sm:$0xff]
        %v918 = vsel %vm395, %v517, 0
        %v921 = vsel %vm395, %v518, 0
        %v924 = vsel %vm395, %v849, 0
        %v927 = vsel %vm395, %v850, 0
        %v930 = vsel %vm395, %v851, 0
        %v933 = vsel %vm395, %v852, 0
        %v936 = vsel %vm395, %v853, 0
        %v939 = vsel %vm395, %v854, 0
        %v942 = vsel %vm395, %v855, 0
        %v945 = vsel %vm395, %v856, 0
        %947 = vmatprep.subr.bf16.mxu0 0
        %948 = vmatpush1.bf16.xpose.msra.mxu0 %v945
        %949 = vmatprep.subr.bf16.mxu0 0
        %950 = vmatpush1.bf16.xpose.msra.mxu0 %v942
        %951 = vmatprep.subr.bf16.mxu0 0
        %952 = vmatpush1.bf16.xpose.msra.mxu0 %v939
        %953 = vmatprep.subr.bf16.mxu0 0
        %954 = vmatpush1.bf16.xpose.msra.mxu0 %v936
        %955 = vmatprep.subr.bf16.mxu0 0
        %956 = vmatpush1.bf16.xpose.msra.mxu0 %v933
        %957 = vmatprep.subr.bf16.mxu0 0
        %958 = vmatpush1.bf16.xpose.msra.mxu0 %v930
        %959 = vmatprep.subr.bf16.mxu0 0
        %960 = vmatpush1.bf16.xpose.msra.mxu0 %v927
        %961 = vmatprep.subr.bf16.mxu0 0
        %962 = vmatpush1.bf16.xpose.msra.mxu0 %v924
        %963 = vmatprep.subr.bf16.mxu0 0
        %964 = vmatpush2.bf16.xpose.msra.mxu0 0
        %965 = vmatprep.subr.bf16.mxu0 0
        %966 = vmatpush2.bf16.xpose.msra.mxu0 0
        %967 = vmatprep.subr.bf16.mxu0 0
        %968 = vmatpush2.bf16.xpose.msra.mxu0 0
        %969 = vmatprep.subr.bf16.mxu0 0
        %970 = vmatpush2.bf16.xpose.msra.mxu0 0
        %971 = vmatprep.subr.bf16.mxu0 0
        %972 = vmatpush2.bf16.xpose.msra.mxu0 0
        %973 = vmatprep.subr.bf16.mxu0 0
        %974 = vmatpush2.bf16.xpose.msra.mxu0 0
        %975 = vmatprep.subr.bf16.mxu0 0
        %976 = vmatpush2.bf16.xpose.msra.mxu0 0
        %977 = vmatprep.subr.bf16.mxu0 0
        %978 = vmatpush2.bf16.xpose.msra.mxu0 0
        %979 = vmatprep.mubr.bf16.mxu0 0
        %980 = vmatmul.mubr.bf16.gmra.mxu0 %v918
        %v981 = vpop.f32.mrf.mxu0
        %v982 = vadd.f32 %v913, %v981
        %v983 = vpop.f32.mrf.mxu0
        %v984 = vpop.f32.mrf.mxu0
        %v985 = vadd.f32 %v914, %v984
        %v986 = vpop.f32.mrf.mxu0
        %987 = vmatprep.mubr.bf16.mxu0 0
        %988 = vmatmul.mubr.bf16.gmra.mxu0 %v921
        %v989 = vpop.f32.mrf.mxu0
        %v990 = vadd.f32 %v915, %v989
        %v991 = vpop.f32.mrf.mxu0
        %v992 = vpop.f32.mrf.mxu0
        %v993 = vadd.f32 %v916, %v992
        %v994 = vpop.f32.mrf.mxu0
        %995 = vdwg.mxu0
        %v997 = vsel %vm395, %v519, 0
        %v1000 = vsel %vm395, %v520, 0
        %v1003 = vsel %vm395, %v857, 0
        %v1006 = vsel %vm395, %v858, 0
        %v1009 = vsel %vm395, %v859, 0
        %v1012 = vsel %vm395, %v860, 0
        %v1015 = vsel %vm395, %v861, 0
        %v1018 = vsel %vm395, %v862, 0
        %v1021 = vsel %vm395, %v863, 0
        %v1024 = vsel %vm395, %v864, 0
        %1026 = vmatprep.subr.bf16.mxu0 0
        %1027 = vmatpush1.bf16.xpose.msra.mxu0 %v1024
        %1028 = vmatprep.subr.bf16.mxu0 0
        %1029 = vmatpush1.bf16.xpose.msra.mxu0 %v1021
        %1030 = vmatprep.subr.bf16.mxu0 0
        %1031 = vmatpush1.bf16.xpose.msra.mxu0 %v1018
        %1032 = vmatprep.subr.bf16.mxu0 0
        %1033 = vmatpush1.bf16.xpose.msra.mxu0 %v1015
        %1034 = vmatprep.subr.bf16.mxu0 0
        %1035 = vmatpush1.bf16.xpose.msra.mxu0 %v1012
        %1036 = vmatprep.subr.bf16.mxu0 0
        %1037 = vmatpush1.bf16.xpose.msra.mxu0 %v1009
        %1038 = vmatprep.subr.bf16.mxu0 0
        %1039 = vmatpush1.bf16.xpose.msra.mxu0 %v1006
        %1040 = vmatprep.subr.bf16.mxu0 0
        %1041 = vmatpush1.bf16.xpose.msra.mxu0 %v1003
        %1042 = vmatprep.subr.bf16.mxu0 0
        %1043 = vmatpush2.bf16.xpose.msra.mxu0 0
        %1044 = vmatprep.subr.bf16.mxu0 0
        %1045 = vmatpush2.bf16.xpose.msra.mxu0 0
        %1046 = vmatprep.subr.bf16.mxu0 0
        %1047 = vmatpush2.bf16.xpose.msra.mxu0 0
        %1048 = vmatprep.subr.bf16.mxu0 0
        %1049 = vmatpush2.bf16.xpose.msra.mxu0 0
        %1050 = vmatprep.subr.bf16.mxu0 0
        %1051 = vmatpush2.bf16.xpose.msra.mxu0 0
        %1052 = vmatprep.subr.bf16.mxu0 0
        %1053 = vmatpush2.bf16.xpose.msra.mxu0 0
        %1054 = vmatprep.subr.bf16.mxu0 0
        %1055 = vmatpush2.bf16.xpose.msra.mxu0 0
        %1056 = vmatprep.subr.bf16.mxu0 0
        %1057 = vmatpush2.bf16.xpose.msra.mxu0 0
        %1058 = vmatprep.mubr.bf16.mxu0 0
        %1059 = vmatmul.mubr.bf16.gmra.mxu0 %v997
        %v1060 = vpop.f32.mrf.mxu0
        %v1061 = vadd.f32 %v913, %v1060
        %v1062 = vpop.f32.mrf.mxu0
        %v1063 = vpop.f32.mrf.mxu0
        %v1064 = vadd.f32 %v914, %v1063
        %v1065 = vpop.f32.mrf.mxu0
        %1066 = vmatprep.mubr.bf16.mxu0 0
        %1067 = vmatmul.mubr.bf16.gmra.mxu0 %v1000
        %v1068 = vpop.f32.mrf.mxu0
        %v1069 = vadd.f32 %v915, %v1068
        %v1070 = vpop.f32.mrf.mxu0
        %v1071 = vpop.f32.mrf.mxu0
        %v1072 = vadd.f32 %v916, %v1071
        %v1073 = vpop.f32.mrf.mxu0
        %1074 = vdwg.mxu0
        %v1076 = vsel %vm395, %v521, 0
        %v1079 = vsel %vm395, %v522, 0
        %v1082 = vsel %vm395, %v865, 0
        %v1085 = vsel %vm395, %v866, 0
        %v1088 = vsel %vm395, %v867, 0
        %v1091 = vsel %vm395, %v868, 0
        %v1094 = vsel %vm395, %v869, 0
        %v1097 = vsel %vm395, %v870, 0
        %v1100 = vsel %vm395, %v871, 0
        %v1103 = vsel %vm395, %v872, 0
        %1105 = vmatprep.subr.bf16.mxu0 0
        %1106 = vmatpush1.bf16.xpose.msra.mxu0 %v1103
        %1107 = vmatprep.subr.bf16.mxu0 0
        %1108 = vmatpush1.bf16.xpose.msra.mxu0 %v1100
        %1109 = vmatprep.subr.bf16.mxu0 0
        %1110 = vmatpush1.bf16.xpose.msra.mxu0 %v1097
        %1111 = vmatprep.subr.bf16.mxu0 0
        %1112 = vmatpush1.bf16.xpose.msra.mxu0 %v1094
        %1113 = vmatprep.subr.bf16.mxu0 0
        %1114 = vmatpush1.bf16.xpose.msra.mxu0 %v1091
        %1115 = vmatprep.subr.bf16.mxu0 0
        %1116 = vmatpush1.bf16.xpose.msra.mxu0 %v1088
        %1117 = vmatprep.subr.bf16.mxu0 0
        %1118 = vmatpush1.bf16.xpose.msra.mxu0 %v1085
        %1119 = vmatprep.subr.bf16.mxu0 0
        %1120 = vmatpush1.bf16.xpose.msra.mxu0 %v1082
        %1121 = vmatprep.subr.bf16.mxu0 0
        %1122 = vmatpush2.bf16.xpose.msra.mxu0 0
        %1123 = vmatprep.subr.bf16.mxu0 0
        %1124 = vmatpush2.bf16.xpose.msra.mxu0 0
        %1125 = vmatprep.subr.bf16.mxu0 0
        %1126 = vmatpush2.bf16.xpose.msra.mxu0 0
        %1127 = vmatprep.subr.bf16.mxu0 0
        %1128 = vmatpush2.bf16.xpose.msra.mxu0 0
        %1129 = vmatprep.subr.bf16.mxu0 0
        %1130 = vmatpush2.bf16.xpose.msra.mxu0 0
        %1131 = vmatprep.subr.bf16.mxu0 0
        %1132 = vmatpush2.bf16.xpose.msra.mxu0 0
        %1133 = vmatprep.subr.bf16.mxu0 0
        %1134 = vmatpush2.bf16.xpose.msra.mxu0 0
        %1135 = vmatprep.subr.bf16.mxu0 0
        %1136 = vmatpush2.bf16.xpose.msra.mxu0 0
        %1137 = vmatprep.mubr.bf16.mxu0 0
        %1138 = vmatmul.mubr.bf16.gmra.mxu0 %v1076
        %v1139 = vpop.f32.mrf.mxu0
        %v1140 = vadd.f32 %v913, %v1139
        %v1141 = vpop.f32.mrf.mxu0
        %v1142 = vpop.f32.mrf.mxu0
        %v1143 = vadd.f32 %v914, %v1142
        %v1144 = vpop.f32.mrf.mxu0
        %1145 = vmatprep.mubr.bf16.mxu0 0
        %1146 = vmatmul.mubr.bf16.gmra.mxu0 %v1079
        %v1147 = vpop.f32.mrf.mxu0
        %v1148 = vadd.f32 %v915, %v1147
        %v1149 = vpop.f32.mrf.mxu0
        %v1150 = vpop.f32.mrf.mxu0
        %v1151 = vadd.f32 %v916, %v1150
        %v1152 = vpop.f32.mrf.mxu0
        %1153 = vdwg.mxu0
        %v1155 = vsel %vm395, %v523, 0
        %v1158 = vsel %vm395, %v524, 0
        %v1161 = vsel %vm395, %v873, 0
        %v1164 = vsel %vm395, %v874, 0
        %v1167 = vsel %vm395, %v875, 0
        %v1170 = vsel %vm395, %v876, 0
        %v1173 = vsel %vm395, %v877, 0
        %v1176 = vsel %vm395, %v878, 0
        %v1179 = vsel %vm395, %v879, 0
        %v1182 = vsel %vm395, %v880, 0
        %1184 = vmatprep.subr.bf16.mxu0 0
        %1185 = vmatpush1.bf16.xpose.msra.mxu0 %v1182
        %1186 = vmatprep.subr.bf16.mxu0 0
        %1187 = vmatpush1.bf16.xpose.msra.mxu0 %v1179
        %1188 = vmatprep.subr.bf16.mxu0 0
        %1189 = vmatpush1.bf16.xpose.msra.mxu0 %v1176
        %1190 = vmatprep.subr.bf16.mxu0 0
        %1191 = vmatpush1.bf16.xpose.msra.mxu0 %v1173
        %1192 = vmatprep.subr.bf16.mxu0 0
        %1193 = vmatpush1.bf16.xpose.msra.mxu0 %v1170
        %1194 = vmatprep.subr.bf16.mxu0 0
        %1195 = vmatpush1.bf16.xpose.msra.mxu0 %v1167
        %1196 = vmatprep.subr.bf16.mxu0 0
        %1197 = vmatpush1.bf16.xpose.msra.mxu0 %v1164
        %1198 = vmatprep.subr.bf16.mxu0 0
        %1199 = vmatpush1.bf16.xpose.msra.mxu0 %v1161
        %1200 = vmatprep.subr.bf16.mxu0 0
        %1201 = vmatpush2.bf16.xpose.msra.mxu0 0
        %1202 = vmatprep.subr.bf16.mxu0 0
        %1203 = vmatpush2.bf16.xpose.msra.mxu0 0
        %1204 = vmatprep.subr.bf16.mxu0 0
        %1205 = vmatpush2.bf16.xpose.msra.mxu0 0
        %1206 = vmatprep.subr.bf16.mxu0 0
        %1207 = vmatpush2.bf16.xpose.msra.mxu0 0
        %1208 = vmatprep.subr.bf16.mxu0 0
        %1209 = vmatpush2.bf16.xpose.msra.mxu0 0
        %1210 = vmatprep.subr.bf16.mxu0 0
        %1211 = vmatpush2.bf16.xpose.msra.mxu0 0
        %1212 = vmatprep.subr.bf16.mxu0 0
        %1213 = vmatpush2.bf16.xpose.msra.mxu0 0
        %1214 = vmatprep.subr.bf16.mxu0 0
        %1215 = vmatpush2.bf16.xpose.msra.mxu0 0
        %1216 = vmatprep.mubr.bf16.mxu0 0
        %1217 = vmatmul.mubr.bf16.gmra.mxu0 %v1155
        %v1218 = vpop.f32.mrf.mxu0
        %v1219 = vadd.f32 %v913, %v1218
        %v1220 = vpop.f32.mrf.mxu0
        %v1221 = vpop.f32.mrf.mxu0
        %v1222 = vadd.f32 %v914, %v1221
        %v1223 = vpop.f32.mrf.mxu0
        %1224 = vmatprep.mubr.bf16.mxu0 0
        %1225 = vmatmul.mubr.bf16.gmra.mxu0 %v1158
        %v1226 = vpop.f32.mrf.mxu0
        %v1227 = vadd.f32 %v915, %v1226
        %v1228 = vpop.f32.mrf.mxu0
        %v1229 = vpop.f32.mrf.mxu0
        %v1230 = vadd.f32 %v916, %v1229
        %v1231 = vpop.f32.mrf.mxu0
        %1232 = vdwg.mxu0
        %1233 = vmax.xlane.f32.xlu0 %v982
        %v1234 = vpop.xlane.xlu0 %1233
        %1235 = vmax.xlane.f32.xlu0 %v985
        %v1236 = vpop.xlane.xlu0 %1235
        %1237 = vmax.xlane.f32.xlu0 %v990
        %v1238 = vpop.xlane.xlu0 %1237
        %1239 = vmax.xlane.f32.xlu0 %v993
        %v1240 = vpop.xlane.xlu0 %1239
        %1241 = vmax.xlane.f32.xlu0 %v1061
        %v1242 = vpop.xlane.xlu0 %1241
        %1243 = vmax.xlane.f32.xlu0 %v1064
        %v1244 = vpop.xlane.xlu0 %1243
        %1245 = vmax.xlane.f32.xlu0 %v1069
        %v1246 = vpop.xlane.xlu0 %1245
        %1247 = vmax.xlane.f32.xlu0 %v1072
        %v1248 = vpop.xlane.xlu0 %1247
        %1249 = vmax.xlane.f32.xlu0 %v1140
        %v1250 = vpop.xlane.xlu0 %1249
        %1251 = vmax.xlane.f32.xlu0 %v1143
        %v1252 = vpop.xlane.xlu0 %1251
        %1253 = vmax.xlane.f32.xlu0 %v1148
        %v1254 = vpop.xlane.xlu0 %1253
        %1255 = vmax.xlane.f32.xlu0 %v1151
        %v1256 = vpop.xlane.xlu0 %1255
        %1257 = vmax.xlane.f32.xlu0 %v1219
        %v1258 = vpop.xlane.xlu0 %1257
        %1259 = vmax.xlane.f32.xlu0 %v1222
        %v1260 = vpop.xlane.xlu0 %1259
        %1261 = vmax.xlane.f32.xlu0 %v1227
        %v1262 = vpop.xlane.xlu0 %1261
        %1263 = vmax.xlane.f32.xlu0 %v1230
        %v1264 = vpop.xlane.xlu0 %1263
        %v1265 = vsub.f32 %v982, %v1234
        %v1266 = vsub.f32 %v985, %v1236
        %v1267 = vsub.f32 %v990, %v1238
        %v1268 = vsub.f32 %v993, %v1240
        %v1269 = vsub.f32 %v1061, %v1242
        %v1270 = vsub.f32 %v1064, %v1244
        %v1271 = vsub.f32 %v1069, %v1246
        %v1272 = vsub.f32 %v1072, %v1248
        %v1273 = vsub.f32 %v1140, %v1250
        %v1274 = vsub.f32 %v1143, %v1252
        %v1275 = vsub.f32 %v1148, %v1254
        %v1276 = vsub.f32 %v1151, %v1256
        %v1277 = vsub.f32 %v1219, %v1258
        %v1278 = vsub.f32 %v1222, %v1260
        %v1279 = vsub.f32 %v1227, %v1262
        %v1280 = vsub.f32 %v1230, %v1264
        %v1281 = vmul.f32 %v1265, 1.442695
        %v1282 = vpow.pop %v1281
        %v1283 = vmul.f32 %v1266, 1.442695
        %v1284 = vpow.pop %v1283
        %v1285 = vmul.f32 %v1267, 1.442695
        %v1286 = vpow.pop %v1285
        %v1287 = vmul.f32 %v1268, 1.442695
        %v1288 = vpow.pop %v1287
        %v1289 = vmul.f32 %v1269, 1.442695
        %v1290 = vpow.pop %v1289
        %v1291 = vmul.f32 %v1270, 1.442695
        %v1292 = vpow.pop %v1291
        %v1293 = vmul.f32 %v1271, 1.442695
        %v1294 = vpow.pop %v1293
        %v1295 = vmul.f32 %v1272, 1.442695
        %v1296 = vpow.pop %v1295
        %v1297 = vmul.f32 %v1273, 1.442695
        %v1298 = vpow.pop %v1297
        %v1299 = vmul.f32 %v1274, 1.442695
        %v1300 = vpow.pop %v1299
        %v1301 = vmul.f32 %v1275, 1.442695
        %v1302 = vpow.pop %v1301
        %v1303 = vmul.f32 %v1276, 1.442695
        %v1304 = vpow.pop %v1303
        %v1305 = vmul.f32 %v1277, 1.442695
        %v1306 = vpow.pop %v1305
        %v1307 = vmul.f32 %v1278, 1.442695
        %v1308 = vpow.pop %v1307
        %v1309 = vmul.f32 %v1279, 1.442695
        %v1310 = vpow.pop %v1309
        %v1311 = vmul.f32 %v1280, 1.442695
        %v1312 = vpow.pop %v1311
        %v1313 = vpack.c.bf16 %v1284, %v1282
        %v1314 = vpack.c.bf16 %v1288, %v1286
        %v1315 = vpack.c.bf16 %v1292, %v1290
        %v1316 = vpack.c.bf16 %v1296, %v1294
        %v1317 = vpack.c.bf16 %v1300, %v1298
        %v1318 = vpack.c.bf16 %v1304, %v1302
        %v1319 = vpack.c.bf16 %v1308, %v1306
        %v1320 = vpack.c.bf16 %v1312, %v1310
        %1321 = vmatprep.subr.bf16.mxu0 0
        %1322 = vmatpush1.bf16.msra.mxu0 %v840
        %1323 = vmatprep.subr.bf16.mxu0 0
        %1324 = vmatpush1.bf16.msra.mxu0 %v839
        %1325 = vmatprep.subr.bf16.mxu0 0
        %1326 = vmatpush1.bf16.msra.mxu0 %v838
        %1327 = vmatprep.subr.bf16.mxu0 0
        %1328 = vmatpush1.bf16.msra.mxu0 %v837
        %1329 = vmatprep.subr.bf16.mxu0 0
        %1330 = vmatpush1.bf16.msra.mxu0 %v836
        %1331 = vmatprep.subr.bf16.mxu0 0
        %1332 = vmatpush1.bf16.msra.mxu0 %v835
        %1333 = vmatprep.subr.bf16.mxu0 0
        %1334 = vmatpush1.bf16.msra.mxu0 %v834
        %1335 = vmatprep.subr.bf16.mxu0 0
        %1336 = vmatpush1.bf16.msra.mxu0 %v833
        %1337 = vmatprep.subr.bf16.mxu0 0
        %1338 = vmatpush2.bf16.msra.mxu0 0
        %1339 = vmatprep.subr.bf16.mxu0 0
        %1340 = vmatpush2.bf16.msra.mxu0 0
        %1341 = vmatprep.subr.bf16.mxu0 0
        %1342 = vmatpush2.bf16.msra.mxu0 0
        %1343 = vmatprep.subr.bf16.mxu0 0
        %1344 = vmatpush2.bf16.msra.mxu0 0
        %1345 = vmatprep.subr.bf16.mxu0 0
        %1346 = vmatpush2.bf16.msra.mxu0 0
        %1347 = vmatprep.subr.bf16.mxu0 0
        %1348 = vmatpush2.bf16.msra.mxu0 0
        %1349 = vmatprep.subr.bf16.mxu0 0
        %1350 = vmatpush2.bf16.msra.mxu0 0
        %1351 = vmatprep.subr.bf16.mxu0 0
        %1352 = vmatpush2.bf16.msra.mxu0 0
        %1353 = vmatprep.mubr.bf16.mxu0 0
        %1354 = vmatmul.mubr.bf16.gmra.mxu0 %v1313
        %v1355 = vpop.f32.mrf.mxu0
        %v1356 = vadd.f32 0.0, %v1355
        %v1357 = vpop.f32.mrf.mxu0
        %v1358 = vpop.f32.mrf.mxu0
        %v1359 = vadd.f32 0.0, %v1358
        %v1360 = vpop.f32.mrf.mxu0
        %1361 = vmatprep.mubr.bf16.mxu0 0
        %1362 = vmatmul.mubr.bf16.gmra.mxu0 %v1314
        %v1363 = vpop.f32.mrf.mxu0
        %v1364 = vadd.f32 0.0, %v1363
        %v1365 = vpop.f32.mrf.mxu0
        %v1366 = vpop.f32.mrf.mxu0
        %v1367 = vadd.f32 0.0, %v1366
        %v1368 = vpop.f32.mrf.mxu0
        %1369 = vmatprep.mubr.bf16.mxu0 0
        %1370 = vmatmul.mubr.bf16.gmra.mxu0 %v1315
        %v1371 = vpop.f32.mrf.mxu0
        %v1372 = vadd.f32 0.0, %v1371
        %v1373 = vpop.f32.mrf.mxu0
        %v1374 = vpop.f32.mrf.mxu0
        %v1375 = vadd.f32 0.0, %v1374
        %v1376 = vpop.f32.mrf.mxu0
        %1377 = vmatprep.mubr.bf16.mxu0 0
        %1378 = vmatmul.mubr.bf16.gmra.mxu0 %v1316
        %v1379 = vpop.f32.mrf.mxu0
        %v1380 = vadd.f32 0.0, %v1379
        %v1381 = vpop.f32.mrf.mxu0
        %v1382 = vpop.f32.mrf.mxu0
        %v1383 = vadd.f32 0.0, %v1382
        %v1384 = vpop.f32.mrf.mxu0
        %1385 = vmatprep.mubr.bf16.mxu0 0
        %1386 = vmatmul.mubr.bf16.gmra.mxu0 %v1317
        %v1387 = vpop.f32.mrf.mxu0
        %v1388 = vadd.f32 0.0, %v1387
        %v1389 = vpop.f32.mrf.mxu0
        %v1390 = vpop.f32.mrf.mxu0
        %v1391 = vadd.f32 0.0, %v1390
        %v1392 = vpop.f32.mrf.mxu0
        %1393 = vmatprep.mubr.bf16.mxu0 0
        %1394 = vmatmul.mubr.bf16.gmra.mxu0 %v1318
        %v1395 = vpop.f32.mrf.mxu0
        %v1396 = vadd.f32 0.0, %v1395
        %v1397 = vpop.f32.mrf.mxu0
        %v1398 = vpop.f32.mrf.mxu0
        %v1399 = vadd.f32 0.0, %v1398
        %v1400 = vpop.f32.mrf.mxu0
        %1401 = vmatprep.mubr.bf16.mxu0 0
        %1402 = vmatmul.mubr.bf16.gmra.mxu0 %v1319
        %v1403 = vpop.f32.mrf.mxu0
        %v1404 = vadd.f32 0.0, %v1403
        %v1405 = vpop.f32.mrf.mxu0
        %v1406 = vpop.f32.mrf.mxu0
        %v1407 = vadd.f32 0.0, %v1406
        %v1408 = vpop.f32.mrf.mxu0
        %1409 = vmatprep.mubr.bf16.mxu0 0
        %1410 = vmatmul.mubr.bf16.gmra.mxu0 %v1320
        %v1411 = vpop.f32.mrf.mxu0
        %v1412 = vadd.f32 0.0, %v1411
        %v1413 = vpop.f32.mrf.mxu0
        %v1414 = vpop.f32.mrf.mxu0
        %v1415 = vadd.f32 0.0, %v1414
        %v1416 = vpop.f32.mrf.mxu0
        %1417 = vdwg.mxu0
        %v1418 = vmax.f32 %v1356, 1e-30
        %v1419 = vmax.f32 %v1359, 1e-30
        %v1420 = vmax.f32 %v1364, 1e-30
        %v1421 = vmax.f32 %v1367, 1e-30
        %v1422 = vmax.f32 %v1372, 1e-30
        %v1423 = vmax.f32 %v1375, 1e-30
        %v1424 = vmax.f32 %v1380, 1e-30
        %v1425 = vmax.f32 %v1383, 1e-30
        %v1426 = vmax.f32 %v1388, 1e-30
        %v1427 = vmax.f32 %v1391, 1e-30
        %v1428 = vmax.f32 %v1396, 1e-30
        %v1429 = vmax.f32 %v1399, 1e-30
        %v1430 = vmax.f32 %v1404, 1e-30
        %v1431 = vmax.f32 %v1407, 1e-30
        %v1432 = vmax.f32 %v1412, 1e-30
        %v1433 = vmax.f32 %v1415, 1e-30
        %1434 = vmatprep.subr.bf16.mxu0 0
        %1435 = vmatpush1.bf16.msra.mxu0 %v888
        %1436 = vmatprep.subr.bf16.mxu0 0
        %1437 = vmatpush1.bf16.msra.mxu0 %v887
        %1438 = vmatprep.subr.bf16.mxu0 0
        %1439 = vmatpush1.bf16.msra.mxu0 %v886
        %1440 = vmatprep.subr.bf16.mxu0 0
        %1441 = vmatpush1.bf16.msra.mxu0 %v885
        %1442 = vmatprep.subr.bf16.mxu0 0
        %1443 = vmatpush1.bf16.msra.mxu0 %v884
        %1444 = vmatprep.subr.bf16.mxu0 0
        %1445 = vmatpush1.bf16.msra.mxu0 %v883
        %1446 = vmatprep.subr.bf16.mxu0 0
        %1447 = vmatpush1.bf16.msra.mxu0 %v882
        %1448 = vmatprep.subr.bf16.mxu0 0
        %1449 = vmatpush1.bf16.msra.mxu0 %v881
        %1450 = vmatprep.subr.bf16.mxu0 0
        %1451 = vmatpush2.bf16.msra.mxu0 0
        %1452 = vmatprep.subr.bf16.mxu0 0
        %1453 = vmatpush2.bf16.msra.mxu0 0
        %1454 = vmatprep.subr.bf16.mxu0 0
        %1455 = vmatpush2.bf16.msra.mxu0 0
        %1456 = vmatprep.subr.bf16.mxu0 0
        %1457 = vmatpush2.bf16.msra.mxu0 0
        %1458 = vmatprep.subr.bf16.mxu0 0
        %1459 = vmatpush2.bf16.msra.mxu0 0
        %1460 = vmatprep.subr.bf16.mxu0 0
        %1461 = vmatpush2.bf16.msra.mxu0 0
        %1462 = vmatprep.subr.bf16.mxu0 0
        %1463 = vmatpush2.bf16.msra.mxu0 0
        %1464 = vmatprep.subr.bf16.mxu0 0
        %1465 = vmatpush2.bf16.msra.mxu0 0
        %1466 = vmatprep.mubr.bf16.mxu0 0
        %1467 = vmatmul.mubr.bf16.gmra.mxu0 %v1313
        %v1468 = vpop.f32.mrf.mxu0
        %v1469 = vadd.f32 0.0, %v1468
        %v1470 = vpop.f32.mrf.mxu0
        %v1471 = vpop.f32.mrf.mxu0
        %v1472 = vadd.f32 0.0, %v1471
        %v1473 = vpop.f32.mrf.mxu0
        %1474 = vmatprep.mubr.bf16.mxu0 0
        %1475 = vmatmul.mubr.bf16.gmra.mxu0 %v1314
        %v1476 = vpop.f32.mrf.mxu0
        %v1477 = vadd.f32 0.0, %v1476
        %v1478 = vpop.f32.mrf.mxu0
        %v1479 = vpop.f32.mrf.mxu0
        %v1480 = vadd.f32 0.0, %v1479
        %v1481 = vpop.f32.mrf.mxu0
        %1482 = vdwg.mxu0
        %1483 = vmatprep.subr.bf16.mxu0 0
        %1484 = vmatpush1.bf16.msra.mxu0 %v896
        %1485 = vmatprep.subr.bf16.mxu0 0
        %1486 = vmatpush1.bf16.msra.mxu0 %v895
        %1487 = vmatprep.subr.bf16.mxu0 0
        %1488 = vmatpush1.bf16.msra.mxu0 %v894
        %1489 = vmatprep.subr.bf16.mxu0 0
        %1490 = vmatpush1.bf16.msra.mxu0 %v893
        %1491 = vmatprep.subr.bf16.mxu0 0
        %1492 = vmatpush1.bf16.msra.mxu0 %v892
        %1493 = vmatprep.subr.bf16.mxu0 0
        %1494 = vmatpush1.bf16.msra.mxu0 %v891
        %1495 = vmatprep.subr.bf16.mxu0 0
        %1496 = vmatpush1.bf16.msra.mxu0 %v890
        %1497 = vmatprep.subr.bf16.mxu0 0
        %1498 = vmatpush1.bf16.msra.mxu0 %v889
        %1499 = vmatprep.subr.bf16.mxu0 0
        %1500 = vmatpush2.bf16.msra.mxu0 0
        %1501 = vmatprep.subr.bf16.mxu0 0
        %1502 = vmatpush2.bf16.msra.mxu0 0
        %1503 = vmatprep.subr.bf16.mxu0 0
        %1504 = vmatpush2.bf16.msra.mxu0 0
        %1505 = vmatprep.subr.bf16.mxu0 0
        %1506 = vmatpush2.bf16.msra.mxu0 0
        %1507 = vmatprep.subr.bf16.mxu0 0
        %1508 = vmatpush2.bf16.msra.mxu0 0
        %1509 = vmatprep.subr.bf16.mxu0 0
        %1510 = vmatpush2.bf16.msra.mxu0 0
        %1511 = vmatprep.subr.bf16.mxu0 0
        %1512 = vmatpush2.bf16.msra.mxu0 0
        %1513 = vmatprep.subr.bf16.mxu0 0
        %1514 = vmatpush2.bf16.msra.mxu0 0
        %1515 = vmatprep.mubr.bf16.mxu0 0
        %1516 = vmatmul.mubr.bf16.gmra.mxu0 %v1315
        %v1517 = vpop.f32.mrf.mxu0
        %v1518 = vadd.f32 0.0, %v1517
        %v1519 = vpop.f32.mrf.mxu0
        %v1520 = vpop.f32.mrf.mxu0
        %v1521 = vadd.f32 0.0, %v1520
        %v1522 = vpop.f32.mrf.mxu0
        %1523 = vmatprep.mubr.bf16.mxu0 0
        %1524 = vmatmul.mubr.bf16.gmra.mxu0 %v1316
        %v1525 = vpop.f32.mrf.mxu0
        %v1526 = vadd.f32 0.0, %v1525
        %v1527 = vpop.f32.mrf.mxu0
        %v1528 = vpop.f32.mrf.mxu0
        %v1529 = vadd.f32 0.0, %v1528
        %v1530 = vpop.f32.mrf.mxu0
        %1531 = vdwg.mxu0
        %1532 = vmatprep.subr.bf16.mxu0 0
        %1533 = vmatpush1.bf16.msra.mxu0 %v904
        %1534 = vmatprep.subr.bf16.mxu0 0
        %1535 = vmatpush1.bf16.msra.mxu0 %v903
        %1536 = vmatprep.subr.bf16.mxu0 0
        %1537 = vmatpush1.bf16.msra.mxu0 %v902
        %1538 = vmatprep.subr.bf16.mxu0 0
        %1539 = vmatpush1.bf16.msra.mxu0 %v901
        %1540 = vmatprep.subr.bf16.mxu0 0
        %1541 = vmatpush1.bf16.msra.mxu0 %v900
        %1542 = vmatprep.subr.bf16.mxu0 0
        %1543 = vmatpush1.bf16.msra.mxu0 %v899
        %1544 = vmatprep.subr.bf16.mxu0 0
        %1545 = vmatpush1.bf16.msra.mxu0 %v898
        %1546 = vmatprep.subr.bf16.mxu0 0
        %1547 = vmatpush1.bf16.msra.mxu0 %v897
        %1548 = vmatprep.subr.bf16.mxu0 0
        %1549 = vmatpush2.bf16.msra.mxu0 0
        %1550 = vmatprep.subr.bf16.mxu0 0
        %1551 = vmatpush2.bf16.msra.mxu0 0
        %1552 = vmatprep.subr.bf16.mxu0 0
        %1553 = vmatpush2.bf16.msra.mxu0 0
        %1554 = vmatprep.subr.bf16.mxu0 0
        %1555 = vmatpush2.bf16.msra.mxu0 0
        %1556 = vmatprep.subr.bf16.mxu0 0
        %1557 = vmatpush2.bf16.msra.mxu0 0
        %1558 = vmatprep.subr.bf16.mxu0 0
        %1559 = vmatpush2.bf16.msra.mxu0 0
        %1560 = vmatprep.subr.bf16.mxu0 0
        %1561 = vmatpush2.bf16.msra.mxu0 0
        %1562 = vmatprep.subr.bf16.mxu0 0
        %1563 = vmatpush2.bf16.msra.mxu0 0
        %1564 = vmatprep.mubr.bf16.mxu0 0
        %1565 = vmatmul.mubr.bf16.gmra.mxu0 %v1317
        %v1566 = vpop.f32.mrf.mxu0
        %v1567 = vadd.f32 0.0, %v1566
        %v1568 = vpop.f32.mrf.mxu0
        %v1569 = vpop.f32.mrf.mxu0
        %v1570 = vadd.f32 0.0, %v1569
        %v1571 = vpop.f32.mrf.mxu0
        %1572 = vmatprep.mubr.bf16.mxu0 0
        %1573 = vmatmul.mubr.bf16.gmra.mxu0 %v1318
        %v1574 = vpop.f32.mrf.mxu0
        %v1575 = vadd.f32 0.0, %v1574
        %v1576 = vpop.f32.mrf.mxu0
        %v1577 = vpop.f32.mrf.mxu0
        %v1578 = vadd.f32 0.0, %v1577
        %v1579 = vpop.f32.mrf.mxu0
        %1580 = vdwg.mxu0
        %1581 = vmatprep.subr.bf16.mxu0 0
        %1582 = vmatpush1.bf16.msra.mxu0 %v912
        %1583 = vmatprep.subr.bf16.mxu0 0
        %1584 = vmatpush1.bf16.msra.mxu0 %v911
        %1585 = vmatprep.subr.bf16.mxu0 0
        %1586 = vmatpush1.bf16.msra.mxu0 %v910
        %1587 = vmatprep.subr.bf16.mxu0 0
        %1588 = vmatpush1.bf16.msra.mxu0 %v909
        %1589 = vmatprep.subr.bf16.mxu0 0
        %1590 = vmatpush1.bf16.msra.mxu0 %v908
        %1591 = vmatprep.subr.bf16.mxu0 0
        %1592 = vmatpush1.bf16.msra.mxu0 %v907
        %1593 = vmatprep.subr.bf16.mxu0 0
        %1594 = vmatpush1.bf16.msra.mxu0 %v906
        %1595 = vmatprep.subr.bf16.mxu0 0
        %1596 = vmatpush1.bf16.msra.mxu0 %v905
        %1597 = vmatprep.subr.bf16.mxu0 0
        %1598 = vmatpush2.bf16.msra.mxu0 0
        %1599 = vmatprep.subr.bf16.mxu0 0
        %1600 = vmatpush2.bf16.msra.mxu0 0
        %1601 = vmatprep.subr.bf16.mxu0 0
        %1602 = vmatpush2.bf16.msra.mxu0 0
        %1603 = vmatprep.subr.bf16.mxu0 0
        %1604 = vmatpush2.bf16.msra.mxu0 0
        %1605 = vmatprep.subr.bf16.mxu0 0
        %1606 = vmatpush2.bf16.msra.mxu0 0
        %1607 = vmatprep.subr.bf16.mxu0 0
        %1608 = vmatpush2.bf16.msra.mxu0 0
        %1609 = vmatprep.subr.bf16.mxu0 0
        %1610 = vmatpush2.bf16.msra.mxu0 0
        %1611 = vmatprep.subr.bf16.mxu0 0
        %1612 = vmatpush2.bf16.msra.mxu0 0
        %1613 = vmatprep.mubr.bf16.mxu0 0
        %1614 = vmatmul.mubr.bf16.gmra.mxu0 %v1319
        %v1615 = vpop.f32.mrf.mxu0
        %v1616 = vadd.f32 0.0, %v1615
        %v1617 = vpop.f32.mrf.mxu0
        %v1618 = vpop.f32.mrf.mxu0
        %v1619 = vadd.f32 0.0, %v1618
        %v1620 = vpop.f32.mrf.mxu0
        %1621 = vmatprep.mubr.bf16.mxu0 0
        %1622 = vmatmul.mubr.bf16.gmra.mxu0 %v1320
        %v1623 = vpop.f32.mrf.mxu0
        %v1624 = vadd.f32 0.0, %v1623
        %v1625 = vpop.f32.mrf.mxu0
        %v1626 = vpop.f32.mrf.mxu0
        %v1627 = vadd.f32 0.0, %v1626
        %v1628 = vpop.f32.mrf.mxu0
        %1629 = vdwg.mxu0
        %v1630 = vrcp.pop %v1418
        %v1631 = vrcp.pop %v1419
        %v1632 = vrcp.pop %v1420
        %v1633 = vrcp.pop %v1421
        %v1634 = vrcp.pop %v1422
        %v1635 = vrcp.pop %v1423
        %v1636 = vrcp.pop %v1424
        %v1637 = vrcp.pop %v1425
        %v1638 = vrcp.pop %v1426
        %v1639 = vrcp.pop %v1427
        %v1640 = vrcp.pop %v1428
        %v1641 = vrcp.pop %v1429
        %v1642 = vrcp.pop %v1430
        %v1643 = vrcp.pop %v1431
        %v1644 = vrcp.pop %v1432
        %v1645 = vrcp.pop %v1433
        %v1646 = vmul.f32 %v1469, %v1630
        %v1647 = vmul.f32 %v1472, %v1631
        %v1648 = vmul.f32 %v1477, %v1632
        %v1649 = vmul.f32 %v1480, %v1633
        %v1650 = vmul.f32 %v1518, %v1634
        %v1651 = vmul.f32 %v1521, %v1635
        %v1652 = vmul.f32 %v1526, %v1636
        %v1653 = vmul.f32 %v1529, %v1637
        %v1654 = vmul.f32 %v1567, %v1638
        %v1655 = vmul.f32 %v1570, %v1639
        %v1656 = vmul.f32 %v1575, %v1640
        %v1657 = vmul.f32 %v1578, %v1641
        %v1658 = vmul.f32 %v1616, %v1642
        %v1659 = vmul.f32 %v1619, %v1643
        %v1660 = vmul.f32 %v1624, %v1644
        %v1661 = vmul.f32 %v1627, %v1645
        %v1662 = vpack.c.bf16 %v1647, %v1646
        %v1663 = vpack.c.bf16 %v1649, %v1648
        %v1664 = vpack.c.bf16 %v1651, %v1650
        %v1665 = vpack.c.bf16 %v1653, %v1652
        %v1666 = vpack.c.bf16 %v1655, %v1654
        %v1667 = vpack.c.bf16 %v1657, %v1656
        %v1668 = vpack.c.bf16 %v1659, %v1658
        %v1669 = vpack.c.bf16 %v1661, %v1660
        %v1670 = vld [vmem:[#allocation5] sm:$0xf]
        %v1671 = vld [vmem:[#allocation5 + $0x4] sm:$0xf]
        %v1672 = vld [vmem:[#allocation5 + $0x8] sm:$0xf]
        %v1673 = vld [vmem:[#allocation5 + $0xc] sm:$0xf]
        %v1674 = vld [vmem:[%s6] sm:$0x1]
        %v1676 = vlaneseq
        %v1677 = vshrl.u32 %v1676, 7
        %v1678 = vsub.s32 0, %v1677
        %v1679 = vrot.slane %v1674, %v1678
        %v1685 = vunpack.c.l.b16 %v1670
        %v1686 = vunpack.c.l.b16 %v1671
        %v1687 = vunpack.c.l.b16 %v1672
        %v1688 = vunpack.c.l.b16 %v1673
        %v1689 = vpack.c.b16 %v1686, %v1685
        %v1690 = vpack.c.b16 %v1688, %v1687
        %v1694 = vsel %vm395, %v1662, 0
        %v1697 = vsel %vm395, %v1663, 0
        %v1700 = vsel %vm395, %v1664, 0
        %v1703 = vsel %vm395, %v1665, 0
        %v1706 = vsel %vm395, %v1666, 0
        %v1709 = vsel %vm395, %v1667, 0
        %v1712 = vsel %vm395, %v1668, 0
        %v1715 = vsel %vm395, %v1669, 0
        %1717 = vmatprep.subr.bf16.mxu0 0
        %1718 = vmatpush1.bf16.msra.mxu0 0
        %1719 = vmatprep.subr.bf16.mxu0 0
        %1720 = vmatpush1.bf16.msra.mxu0 0
        %1721 = vmatprep.subr.bf16.mxu0 0
        %1722 = vmatpush1.bf16.msra.mxu0 0
        %1723 = vmatprep.subr.bf16.mxu0 0
        %1724 = vmatpush1.bf16.msra.mxu0 0
        %1725 = vmatprep.subr.bf16.mxu0 0
        %1726 = vmatpush1.bf16.msra.mxu0 0
        %1727 = vmatprep.subr.bf16.mxu0 0
        %1728 = vmatpush1.bf16.msra.mxu0 0
        %1729 = vmatprep.subr.bf16.mxu0 0
        %1730 = vmatpush1.bf16.msra.mxu0 %v1690
        %1731 = vmatprep.subr.bf16.mxu0 0
        %1732 = vmatpush1.bf16.msra.mxu0 %v1689
        %1733 = vmatprep.subr.bf16.mxu0 0
        %1734 = vmatpush2.bf16.msra.mxu0 0
        %1735 = vmatprep.subr.bf16.mxu0 0
        %1736 = vmatpush2.bf16.msra.mxu0 0
        %1737 = vmatprep.subr.bf16.mxu0 0
        %1738 = vmatpush2.bf16.msra.mxu0 0
        %1739 = vmatprep.subr.bf16.mxu0 0
        %1740 = vmatpush2.bf16.msra.mxu0 0
        %1741 = vmatprep.subr.bf16.mxu0 0
        %1742 = vmatpush2.bf16.msra.mxu0 0
        %1743 = vmatprep.subr.bf16.mxu0 0
        %1744 = vmatpush2.bf16.msra.mxu0 0
        %1745 = vmatprep.subr.bf16.mxu0 0
        %1746 = vmatpush2.bf16.msra.mxu0 0
        %1747 = vmatprep.subr.bf16.mxu0 0
        %1748 = vmatpush2.bf16.msra.mxu0 0
        %1749 = vmatprep.mubr.bf16.mxu0 0
        %1750 = vmatmul.mubr.bf16.gmra.mxu0 %v1694
        %v1751 = vpop.f32.mrf.mxu0
        %v1752 = vadd.f32 %v1679, %v1751
        %v1753 = vpop.f32.mrf.mxu0
        %v1754 = vpop.f32.mrf.mxu0
        %v1755 = vadd.f32 %v1679, %v1754
        %v1756 = vpop.f32.mrf.mxu0
        %1757 = vmatprep.mubr.bf16.mxu0 0
        %1758 = vmatmul.mubr.bf16.gmra.mxu0 %v1697
        %v1759 = vpop.f32.mrf.mxu0
        %v1760 = vadd.f32 %v1679, %v1759
        %v1761 = vpop.f32.mrf.mxu0
        %v1762 = vpop.f32.mrf.mxu0
        %v1763 = vadd.f32 %v1679, %v1762
        %v1764 = vpop.f32.mrf.mxu0
        %1765 = vmatprep.mubr.bf16.mxu0 0
        %1766 = vmatmul.mubr.bf16.gmra.mxu0 %v1700
        %v1767 = vpop.f32.mrf.mxu0
        %v1768 = vadd.f32 %v1679, %v1767
        %v1769 = vpop.f32.mrf.mxu0
        %v1770 = vpop.f32.mrf.mxu0
        %v1771 = vadd.f32 %v1679, %v1770
        %v1772 = vpop.f32.mrf.mxu0
        %1773 = vmatprep.mubr.bf16.mxu0 0
        %1774 = vmatmul.mubr.bf16.gmra.mxu0 %v1703
        %v1775 = vpop.f32.mrf.mxu0
        %v1776 = vadd.f32 %v1679, %v1775
        %v1777 = vpop.f32.mrf.mxu0
        %v1778 = vpop.f32.mrf.mxu0
        %v1779 = vadd.f32 %v1679, %v1778
        %v1780 = vpop.f32.mrf.mxu0
        %1781 = vmatprep.mubr.bf16.mxu0 0
        %1782 = vmatmul.mubr.bf16.gmra.mxu0 %v1706
        %v1783 = vpop.f32.mrf.mxu0
        %v1784 = vadd.f32 %v1679, %v1783
        %v1785 = vpop.f32.mrf.mxu0
        %v1786 = vpop.f32.mrf.mxu0
        %v1787 = vadd.f32 %v1679, %v1786
        %v1788 = vpop.f32.mrf.mxu0
        %1789 = vmatprep.mubr.bf16.mxu0 0
        %1790 = vmatmul.mubr.bf16.gmra.mxu0 %v1709
        %v1791 = vpop.f32.mrf.mxu0
        %v1792 = vadd.f32 %v1679, %v1791
        %v1793 = vpop.f32.mrf.mxu0
        %v1794 = vpop.f32.mrf.mxu0
        %v1795 = vadd.f32 %v1679, %v1794
        %v1796 = vpop.f32.mrf.mxu0
        %1797 = vmatprep.mubr.bf16.mxu0 0
        %1798 = vmatmul.mubr.bf16.gmra.mxu0 %v1712
        %v1799 = vpop.f32.mrf.mxu0
        %v1800 = vadd.f32 %v1679, %v1799
        %v1801 = vpop.f32.mrf.mxu0
        %v1802 = vpop.f32.mrf.mxu0
        %v1803 = vadd.f32 %v1679, %v1802
        %v1804 = vpop.f32.mrf.mxu0
        %1805 = vmatprep.mubr.bf16.mxu0 0
        %1806 = vmatmul.mubr.bf16.gmra.mxu0 %v1715
        %v1807 = vpop.f32.mrf.mxu0
        %v1808 = vadd.f32 %v1679, %v1807
        %v1809 = vpop.f32.mrf.mxu0
        %v1810 = vpop.f32.mrf.mxu0
        %v1811 = vadd.f32 %v1679, %v1810
        %v1812 = vpop.f32.mrf.mxu0
        %1813 = vdwg.mxu0
        %1814 = vst.msk [vmem:[%s312] sm:$0xff] %vm395, %v1752
        %1815 = vst.msk [vmem:[%s312 + $0x8] sm:$0xff] %vm395, %v1755
        %1816 = vst.msk [vmem:[%s312 + $0x10] sm:$0xff] %vm395, %v1760
        %1817 = vst.msk [vmem:[%s312 + $0x18] sm:$0xff] %vm395, %v1763
        %1818 = vst.msk [vmem:[%s312 + $0x20] sm:$0xff] %vm395, %v1768
        %1819 = vst.msk [vmem:[%s312 + $0x28] sm:$0xff] %vm395, %v1771
        %1820 = vst.msk [vmem:[%s312 + $0x30] sm:$0xff] %vm395, %v1776
        %1821 = vst.msk [vmem:[%s312 + $0x38] sm:$0xff] %vm395, %v1779
        %1822 = vst.msk [vmem:[%s312 + $0x40] sm:$0xff] %vm395, %v1784
        %1823 = vst.msk [vmem:[%s312 + $0x48] sm:$0xff] %vm395, %v1787
        %1824 = vst.msk [vmem:[%s312 + $0x50] sm:$0xff] %vm395, %v1792
        %1825 = vst.msk [vmem:[%s312 + $0x58] sm:$0xff] %vm395, %v1795
        %1826 = vst.msk [vmem:[%s312 + $0x60] sm:$0xff] %vm395, %v1800
        %1827 = vst.msk [vmem:[%s312 + $0x68] sm:$0xff] %vm395, %v1803
        %1828 = vst.msk [vmem:[%s312 + $0x70] sm:$0xff] %vm395, %v1808
        %1829 = vst.msk [vmem:[%s312 + $0x78] sm:$0xff] %vm395, %v1811
        %s1830 = sand.u32 %s185, 1
        %s1831 = scalar_lea.sflag [#allocation4], %s1830
        %s1832 = sand.u32 %s185, 1
        %s1833 = smul.addr %s1832, 128
        %s1834 = scalar_lea.vmem [#allocation7], %s1833
        // Predicated region
        $region57: #{tpu_custom_call.1} parent=47 // pred_check
          %p1835 = pneg %p195
        $region58: #{tpu_custom_call.1} parent=47 // pred_check_branch
          %1837 = sbr.rel (%p1835) target = $region60
        $region59: #{tpu_custom_call.1} parent=47 // pred_region
          %s1838 = smul.u32 4, %s25
          %s1840 = ssub.s32 2048, 2048
          %1841 = vsyncadd %s1831, %s1840
          %s1842 = smul.addr %s1838, 4
          %s1843 = smul.addr %s1842, 128
          %s1844 = scalar_lea.hbm %s7, %s1843
          %s1845 = sshll.u32 %s1834, 4
          %s1846 = int_to_ptr.vmem [resolvable:$true] %s1845
          %1851 = dma.vmem_to_hbm [thread:$0]  %s1846, 2048, %s1844, %s1831, 128, 128, 8
        $region60: #{tpu_custom_call.1} parent=47 // pred_fallthru
          _
      $region48: #{tpu_custom_call.1} parent=5 // pred_fallthru
        _
      %p1852 = scmp.le.s32.totalorder 2, %s20
      // Predicated region
      $region61: #{tpu_custom_call.1} parent=5 // pred_check
        %p1853 = pneg %p1852
      $region62: #{tpu_custom_call.1} parent=5 // pred_check_branch
        %1855 = sbr.rel (%p1853) target = $region64
      $region63: #{tpu_custom_call.1} parent=5 // pred_region
        %s1856 = ssub.s32 %s20, 2
        // Predicated region
        $region65: #{tpu_custom_call.1} parent=63 // pred_check
          %p1857 = pneg %p201
        $region66: #{tpu_custom_call.1} parent=63 // pred_check_branch
          %1859 = sbr.rel (%p1857) target = $region68
        $region67: #{tpu_custom_call.1} parent=63 // pred_region
          %s1860 = sand.u32 %s186, 1
          %s1861 = scalar_lea.sflag [#allocation4], %s1860
          %s1862 = sand.u32 %s186, 1
          %s1863 = smul.addr %s1862, 128
          %s1864 = scalar_lea.vmem [#allocation7], %s1863
          %1865 = dma.done %s1861, 2048
        $region68: #{tpu_custom_call.1} parent=63 // pred_fallthru
          _
      $region64: #{tpu_custom_call.1} parent=5 // pred_fallthru
        _
    $region6: #{tpu_custom_call.1} parent=1 // loop_footer
      %s24 = sadd.s32 1, %s20
    $region7: #{tpu_custom_call.1} parent=1 // loop_footer_branch
      %19 = sbr.rel target = $region3
    $region8: #{tpu_custom_call.1} parent=1 // loop_exit
      _
    %1866 = vsyncpa [#allocation3], 1
    %s1867 = scalar_lea.sflag [#allocation3], 1
    %1868 = vsyncpa %s1867, 1
    %1869 = vsyncpa [#allocation6], 1
    %1870 = vsyncpa [#allocation4], 1
    %s1871 = scalar_lea.sflag [#allocation4], 1
    %1872 = vsyncpa %s1871, 1

</llo_original>
